<compile_context>
chip_gen: v7x
topology: tpu7x:2x2x1
jax: 0.10.0
libtpu: 0.0.40
codegen_flags: <defaults>
</compile_context>

<pallas_src>
import functools

import jax
import jax.numpy as jnp
from jax import lax
from jax.experimental import pallas as pl
from jax.experimental.pallas import tpu as pltpu


def _bottleneck_kernel(x_ref, w1_ref, s1_ref, b1_ref,
                       w2_ref, s2_ref, b2_ref,
                       w3_ref, s3_ref, b3_ref,
                       o_ref):
    # x_ref block : (1, 1, TH+2, W, Cin)   row-tile with 1-row halo top/bottom
    # o_ref block : (1, 1, TH,   W, Cin)
    _, _, th2, W, Cin = x_ref.shape
    TH = th2 - 2
    P = w1_ref.shape[1]

    t = pl.program_id(1)              # row-tile index within the image
    n_tiles = pl.num_programs(1)

    x = x_ref[0, 0]                   # (TH+2, W, Cin) float32

    # ---- conv1 (1x1) + bn1 + relu (halo rows included: they feed conv2) ----
    h1 = jnp.dot(x.reshape(th2 * W, Cin).astype(jnp.bfloat16), w1_ref[...],
                 preferred_element_type=jnp.float32)
    h1 = jnp.maximum(h1 * s1_ref[...] + b1_ref[...], 0.0)        # (th2*W, P)
    h1 = h1.reshape(th2, W, P)

    # Halo rows that fall outside the image must act as the 'SAME' zero
    # padding of conv2 (relu(bn1(conv1(0))) != 0, so mask explicitly).
    row = lax.broadcasted_iota(jnp.int32, (th2, 1, 1), 0)
    keep = jnp.logical_and(jnp.logical_or(row > 0, t > 0),
                           jnp.logical_or(row < th2 - 1, t < n_tiles - 1))
    h1 = jnp.where(keep, h1, 0.0)

    # ---- conv2 (3x3, stride 1, pad 1) + bn2 + relu : one im2col matmul ----
    zcol = jnp.zeros((th2, 1, P), jnp.float32)
    h1p = jnp.concatenate([zcol, h1, zcol], axis=1)               # (th2, W+2, P)
    taps = [h1p[dy:dy + TH, dx:dx + W, :]
            for dy in range(3) for dx in range(3)]
    patches = jnp.concatenate(taps, axis=-1).reshape(TH * W, 9 * P)
    h2 = jnp.dot(patches.astype(jnp.bfloat16), w2_ref[...],
                 preferred_element_type=jnp.float32)              # K = 9P
    h2 = jnp.maximum(h2 * s2_ref[...] + b2_ref[...], 0.0)         # (TH*W, P)

    # ---- conv3 (1x1) + bn3 + residual add + relu ----
    h3 = jnp.dot(h2.astype(jnp.bfloat16), w3_ref[...],
                 preferred_element_type=jnp.float32)              # (TH*W, Cin)
    res = x[1:TH + 1].reshape(TH * W, Cin)                        # f32 residual
    out = jnp.maximum(h3 * s3_ref[...] + b3_ref[...] + res, 0.0)

    o_ref[0, 0] = out.reshape(TH, W, Cin).astype(o_ref.dtype)


def _pick_block_rows(H, W, Cin, vmem_budget=2 * 1024 * 1024):
    """Largest divisor of H whose (rows+2, W, Cin) f32 tile fits the budget."""
    best = 1
    for r in range(1, H + 1):
        if H % r == 0 and (r + 2) * W * Cin * 4 <= vmem_budget:
            best = r
    return best


def bottleneck_forward_nhwc(x, w1, s1, b1, w2, s2, b2, w3, s3, b3,
                            *, block_rows=None):
    """x: (N, H, W, Cin) float32 with Cin == 4 * planes (downsample=None)."""
    N, H, W, Cin = x.shape
    P = w1.shape[1]
    if block_rows is None:
        block_rows = _pick_block_rows(H, W, Cin)
    TH = int(block_rows)
    if H % TH != 0:
        raise ValueError(f"block_rows={TH} must divide H={H}")
    n_tiles = H // TH

    # bf16 MXU operands (accumulation stays f32 inside the kernel).
    w1b = w1.astype(jnp.bfloat16)                                   # (Cin, P)
    w2b = w2.reshape(9 * P, P).astype(jnp.bfloat16)                 # (kh,kw,in)->rows
    w3b = w3.astype(jnp.bfloat16)                                   # (P, Cin)
    s1_, b1_ = s1.reshape(1, P).astype(jnp.float32), b1.reshape(1, P).astype(jnp.float32)
    s2_, b2_ = s2.reshape(1, P).astype(jnp.float32), b2.reshape(1, P).astype(jnp.float32)
    s3_, b3_ = s3.reshape(1, Cin).astype(jnp.float32), b3.reshape(1, Cin).astype(jnp.float32)

    # Overlapping row-tiles with a 1-row halo (zero rows at the image border).
    xp = jnp.pad(x, ((0, 0), (1, 1), (0, 0), (0, 0)))
    x_tiles = jnp.stack(
        [lax.slice_in_dim(xp, i * TH, i * TH + TH + 2, axis=1)
         for i in range(n_tiles)], axis=1)          # (N, n_tiles, TH+2, W, Cin)

    def _full(a):
        nd = a.ndim
        return pl.BlockSpec(a.shape, lambda n, t, _nd=nd: (0,) * _nd)

    out_tiles = pl.pallas_call(
        _bottleneck_kernel,
        out_shape=jax.ShapeDtypeStruct((N, n_tiles, TH, W, Cin), x.dtype),
        grid_spec=pltpu.PrefetchScalarGridSpec(
            num_scalar_prefetch=0,
            grid=(N, n_tiles),
            in_specs=[
                pl.BlockSpec((1, 1, TH + 2, W, Cin),
                             lambda n, t: (n, t, 0, 0, 0)),          # x tile
                _full(w1b), _full(s1_), _full(b1_),
                _full(w2b), _full(s2_), _full(b2_),
                _full(w3b), _full(s3_), _full(b3_),
            ],
            out_specs=pl.BlockSpec((1, 1, TH, W, Cin),
                                   lambda n, t: (n, t, 0, 0, 0)),
        ),
        compiler_params=pltpu.CompilerParams(
            dimension_semantics=("parallel", "parallel")),
    )(x_tiles, w1b, s1_, b1_, w2b, s2_, b2_, w3b, s3_, b3_)

    return out_tiles.reshape(N, H, W, Cin)


@functools.partial(jax.jit, static_argnames=("block_rows",))
def bottleneck_forward(x_nchw, w1, s1, b1, w2, s2, b2, w3, s3, b3,
                       block_rows=None):
    """NCHW interface matching the PyTorch module."""
    x = jnp.transpose(x_nchw, (0, 2, 3, 1))                        # -> NHWC
    y = bottleneck_forward_nhwc(x, w1, s1, b1, w2, s2, b2, w3, s3, b3,
                                block_rows=block_rows)
    return jnp.transpose(y, (0, 3, 1, 2))                          # -> NCHW


def _reference_forward(x_nchw, w1, s1, b1, w2, s2, b2, w3, s3, b3):
    """Pure-JAX f32 reference (module semantics) for correctness checking."""
    x = jnp.transpose(x_nchw, (0, 2, 3, 1))
    h = jnp.einsum('nhwc,cp->nhwp', x, w1)
    h = jnp.maximum(h * s1 + b1, 0.0)
    h = lax.conv_general_dilated(h, w2, (1, 1), 'SAME',
                                 dimension_numbers=('NHWC', 'HWIO', 'NHWC'))
    h = jnp.maximum(h * s2 + b2, 0.0)
    h = jnp.einsum('nhwp,pc->nhwc', h, w3)
    h = h * s3 + b3
    out = jnp.maximum(h + x, 0.0)
    return jnp.transpose(out, (0, 3, 1, 2))


if __name__ == "__main__":
    # Small shapes consistent with Bottleneck(in_planes=4*planes, planes, stride=1).
    N, planes, H, W = 2, 32, 16, 16
    in_planes = 4 * planes        # expansion=4, downsample=None -> residual adds directly
    eps = 1e-5

    key = jax.random.PRNGKey(0)
    ks = jax.random.split(key, 16)

    x = jax.random.normal(ks[0], (N, in_planes, H, W), jnp.float32)

    # Conv weights in kernel layout (in-channels x out-channels; HWIO for 3x3).
    w1 = jax.random.normal(ks[1], (in_planes, planes), jnp.float32) * 0.1
    w2 = jax.random.normal(ks[2], (3, 3, planes, planes), jnp.float32) * 0.1
    w3 = jax.random.normal(ks[3], (planes, in_planes), jnp.float32) * 0.1

    # BatchNorm parameters (deterministic, nontrivial), folded to scale/bias.
    def bn_fold(kg, kb, km, kv, c):
        gamma = 1.0 + 0.1 * jax.random.normal(kg, (c,), jnp.float32)
        beta = 0.1 * jax.random.normal(kb, (c,), jnp.float32)
        mean = 0.1 * jax.random.normal(km, (c,), jnp.float32)
        var = jnp.abs(jax.random.normal(kv, (c,), jnp.float32)) + 0.5
        scale = gamma / jnp.sqrt(var + eps)
        bias = beta - mean * scale
        return scale, bias

    s1, b1 = bn_fold(ks[4], ks[5], ks[6], ks[7], planes)
    s2, b2 = bn_fold(ks[8], ks[9], ks[10], ks[11], planes)
    s3, b3 = bn_fold(ks[12], ks[13], ks[14], ks[15], in_planes)

    # block_rows=8 -> 2 row-tiles per image (exercises the halo path).
    out = bottleneck_forward(x, w1, s1, b1, w2, s2, b2, w3, s3, b3, block_rows=8)
    out = jax.block_until_ready(out)

    ref = _reference_forward(x, w1, s1, b1, w2, s2, b2, w3, s3, b3)
    assert out.shape == (N, in_planes, H, W)
    # bf16 MXU operands with f32 accumulation: tolerance loosened vs pure-f32 ref.
    assert jnp.allclose(out, ref, atol=1e-1, rtol=1e-1), "mismatch vs reference"
    rel_err = jnp.linalg.norm(out - ref) / jnp.linalg.norm(ref)
    assert rel_err < 5e-2, f"relative error too large: {rel_err}"

    print("KERNEL_OK")
</pallas_src>

<mosaic_0001>
module attributes {stable_mosaic.version = 11 : i64} {
  func.func @_bottleneck_kernel(%arg0: i32, %arg1: i32, %arg2: memref<1x1x10x16x128xf32, #tpu.memory_space<vmem>>, %arg3: memref<128x32xbf16, #tpu.memory_space<vmem>>, %arg4: memref<1x32xf32, #tpu.memory_space<vmem>>, %arg5: memref<1x32xf32, #tpu.memory_space<vmem>>, %arg6: memref<288x32xbf16, #tpu.memory_space<vmem>>, %arg7: memref<1x32xf32, #tpu.memory_space<vmem>>, %arg8: memref<1x32xf32, #tpu.memory_space<vmem>>, %arg9: memref<32x128xbf16, #tpu.memory_space<vmem>>, %arg10: memref<1x128xf32, #tpu.memory_space<vmem>>, %arg11: memref<1x128xf32, #tpu.memory_space<vmem>>, %arg12: memref<1x1x8x16x128xf32, #tpu.memory_space<vmem>>) attributes {dimension_semantics = [#tpu.dimension_semantics<parallel>, #tpu.dimension_semantics<parallel>], iteration_bounds = array<i64: 2, 2>, scalar_prefetch = 0 : i64, scratch_operands = 0 : i64, tpu.core_type = #tpu.core_type<tc>, window_params = [{transform_indices = @transform_0, window_bounds = array<i64: 1, 1, 10, 16, 128>}, {pipeline_mode = #tpu.pipeline_mode<synchronous>, transform_indices = @transform_1, window_bounds = array<i64: 128, 32>}, {pipeline_mode = #tpu.pipeline_mode<synchronous>, transform_indices = @transform_2, window_bounds = array<i64: 1, 32>}, {pipeline_mode = #tpu.pipeline_mode<synchronous>, transform_indices = @transform_3, window_bounds = array<i64: 1, 32>}, {pipeline_mode = #tpu.pipeline_mode<synchronous>, transform_indices = @transform_4, window_bounds = array<i64: 288, 32>}, {pipeline_mode = #tpu.pipeline_mode<synchronous>, transform_indices = @transform_5, window_bounds = array<i64: 1, 32>}, {pipeline_mode = #tpu.pipeline_mode<synchronous>, transform_indices = @transform_6, window_bounds = array<i64: 1, 32>}, {pipeline_mode = #tpu.pipeline_mode<synchronous>, transform_indices = @transform_7, window_bounds = array<i64: 32, 128>}, {pipeline_mode = #tpu.pipeline_mode<synchronous>, transform_indices = @transform_8, window_bounds = array<i64: 1, 128>}, {pipeline_mode = #tpu.pipeline_mode<synchronous>, transform_indices = @transform_9, window_bounds = array<i64: 1, 128>}, {transform_indices = @transform_10, window_bounds = array<i64: 1, 1, 8, 16, 128>}]} {
    %c0 = arith.constant 0 : index
    %c0_0 = arith.constant 0 : index
    %c0_1 = arith.constant 0 : index
    %c0_2 = arith.constant 0 : index
    %c0_3 = arith.constant 0 : index
    %0 = vector.load %arg2[%c0, %c0_0, %c0_1, %c0_2, %c0_3] : memref<1x1x10x16x128xf32, #tpu.memory_space<vmem>>, vector<1x1x10x16x128xf32>
    %1 = vector.shape_cast %0 : vector<1x1x10x16x128xf32> to vector<10x16x128xf32>
    %2 = vector.shape_cast %1 : vector<10x16x128xf32> to vector<160x128xf32>
    %3 = arith.truncf %2 : vector<160x128xf32> to vector<160x128xbf16>
    %c0_4 = arith.constant 0 : index
    %c0_5 = arith.constant 0 : index
    %4 = vector.load %arg3[%c0_4, %c0_5] : memref<128x32xbf16, #tpu.memory_space<vmem>>, vector<128x32xbf16>
    %cst = arith.constant dense<0.000000e+00> : vector<160x32xf32>
    %5 = tpu.matmul %3, %4, %cst {dimension_numbers = #tpu.dot_dimension_numbers<[1], [0], [0], [1], [0, 0, 1, 1], [], []>} : vector<160x128xbf16>, vector<128x32xbf16>, vector<160x32xf32> -> vector<160x32xf32>
    %c0_6 = arith.constant 0 : index
    %c0_7 = arith.constant 0 : index
    %6 = vector.load %arg4[%c0_6, %c0_7] : memref<1x32xf32, #tpu.memory_space<vmem>>, vector<1x32xf32>
    %7 = vector.broadcast %6 : vector<1x32xf32> to vector<160x32xf32>
    %8 = arith.mulf %5, %7 : vector<160x32xf32>
    %c0_8 = arith.constant 0 : index
    %c0_9 = arith.constant 0 : index
    %9 = vector.load %arg5[%c0_8, %c0_9] : memref<1x32xf32, #tpu.memory_space<vmem>>, vector<1x32xf32>
    %10 = vector.broadcast %9 : vector<1x32xf32> to vector<160x32xf32>
    %11 = arith.addf %8, %10 : vector<160x32xf32>
    %cst_10 = arith.constant 0.000000e+00 : f32
    %12 = vector.broadcast %cst_10 : f32 to vector<160x32xf32>
    %13 = arith.maximumf %11, %12 : vector<160x32xf32>
    %14 = vector.shape_cast %13 : vector<160x32xf32> to vector<10x16x32xf32>
    %15 = tpu.iota {dimensions = array<i32: 0>} : vector<10x1x1xi32>
    %c0_i32 = arith.constant 0 : i32
    %16 = vector.broadcast %c0_i32 : i32 to vector<10x1x1xi32>
    %17 = arith.cmpi sgt, %15, %16 : vector<10x1x1xi32>
    %c0_i32_11 = arith.constant 0 : i32
    %18 = arith.cmpi sgt, %arg1, %c0_i32_11 : i32
    %19 = vector.broadcast %18 : i1 to vector<10x1x1xi1>
    %20 = arith.ori %17, %19 : vector<10x1x1xi1>
    %c9_i32 = arith.constant 9 : i32
    %21 = vector.broadcast %c9_i32 : i32 to vector<10x1x1xi32>
    %22 = arith.cmpi slt, %15, %21 : vector<10x1x1xi32>
    %c1_i32 = arith.constant 1 : i32
    %23 = arith.cmpi slt, %arg1, %c1_i32 : i32
    %24 = vector.broadcast %23 : i1 to vector<10x1x1xi1>
    %25 = arith.ori %22, %24 : vector<10x1x1xi1>
    %26 = arith.andi %20, %25 : vector<10x1x1xi1>
    %cst_12 = arith.constant 0.000000e+00 : f32
    %27 = vector.shape_cast %26 : vector<10x1x1xi1> to vector<10x1x1xi1>
    %28 = vector.broadcast %27 : vector<10x1x1xi1> to vector<10x16x32xi1>
    %29 = vector.broadcast %cst_12 : f32 to vector<10x16x32xf32>
    %30 = arith.select %28, %14, %29 : vector<10x16x32xi1>, vector<10x16x32xf32>
    %cst_13 = arith.constant 0.000000e+00 : f32
    %31 = vector.broadcast %cst_13 : f32 to vector<10x1x32xf32>
    %32 = tpu.concatenate %31, %30, %31 in 1 : vector<10x1x32xf32>, vector<10x16x32xf32>, vector<10x1x32xf32> -> vector<10x18x32xf32>
    %33 = vector.extract_strided_slice %32 {offsets = [0, 0, 0], sizes = [8, 16, 32], strides = [1, 1, 1]} : vector<10x18x32xf32> to vector<8x16x32xf32>
    %34 = vector.extract_strided_slice %32 {offsets = [0, 1, 0], sizes = [8, 16, 32], strides = [1, 1, 1]} : vector<10x18x32xf32> to vector<8x16x32xf32>
    %35 = vector.extract_strided_slice %32 {offsets = [0, 2, 0], sizes = [8, 16, 32], strides = [1, 1, 1]} : vector<10x18x32xf32> to vector<8x16x32xf32>
    %36 = vector.extract_strided_slice %32 {offsets = [1, 0, 0], sizes = [8, 16, 32], strides = [1, 1, 1]} : vector<10x18x32xf32> to vector<8x16x32xf32>
    %37 = vector.extract_strided_slice %32 {offsets = [1, 1, 0], sizes = [8, 16, 32], strides = [1, 1, 1]} : vector<10x18x32xf32> to vector<8x16x32xf32>
    %38 = vector.extract_strided_slice %32 {offsets = [1, 2, 0], sizes = [8, 16, 32], strides = [1, 1, 1]} : vector<10x18x32xf32> to vector<8x16x32xf32>
    %39 = vector.extract_strided_slice %32 {offsets = [2, 0, 0], sizes = [8, 16, 32], strides = [1, 1, 1]} : vector<10x18x32xf32> to vector<8x16x32xf32>
    %40 = vector.extract_strided_slice %32 {offsets = [2, 1, 0], sizes = [8, 16, 32], strides = [1, 1, 1]} : vector<10x18x32xf32> to vector<8x16x32xf32>
    %41 = vector.extract_strided_slice %32 {offsets = [2, 2, 0], sizes = [8, 16, 32], strides = [1, 1, 1]} : vector<10x18x32xf32> to vector<8x16x32xf32>
    %42 = tpu.concatenate %33, %34, %35, %36, %37, %38, %39, %40, %41 in 2 : vector<8x16x32xf32>, vector<8x16x32xf32>, vector<8x16x32xf32>, vector<8x16x32xf32>, vector<8x16x32xf32>, vector<8x16x32xf32>, vector<8x16x32xf32>, vector<8x16x32xf32>, vector<8x16x32xf32> -> vector<8x16x288xf32>
    %43 = vector.shape_cast %42 : vector<8x16x288xf32> to vector<128x288xf32>
    %44 = arith.truncf %43 : vector<128x288xf32> to vector<128x288xbf16>
    %c0_14 = arith.constant 0 : index
    %c0_15 = arith.constant 0 : index
    %45 = vector.load %arg6[%c0_14, %c0_15] : memref<288x32xbf16, #tpu.memory_space<vmem>>, vector<288x32xbf16>
    %cst_16 = arith.constant dense<0.000000e+00> : vector<128x32xf32>
    %46 = tpu.matmul %44, %45, %cst_16 {dimension_numbers = #tpu.dot_dimension_numbers<[1], [0], [0], [1], [0, 0, 1, 1], [], []>} : vector<128x288xbf16>, vector<288x32xbf16>, vector<128x32xf32> -> vector<128x32xf32>
    %c0_17 = arith.constant 0 : index
    %c0_18 = arith.constant 0 : index
    %47 = vector.load %arg7[%c0_17, %c0_18] : memref<1x32xf32, #tpu.memory_space<vmem>>, vector<1x32xf32>
    %48 = vector.broadcast %47 : vector<1x32xf32> to vector<128x32xf32>
    %49 = arith.mulf %46, %48 : vector<128x32xf32>
    %c0_19 = arith.constant 0 : index
    %c0_20 = arith.constant 0 : index
    %50 = vector.load %arg8[%c0_19, %c0_20] : memref<1x32xf32, #tpu.memory_space<vmem>>, vector<1x32xf32>
    %51 = vector.broadcast %50 : vector<1x32xf32> to vector<128x32xf32>
    %52 = arith.addf %49, %51 : vector<128x32xf32>
    %cst_21 = arith.constant 0.000000e+00 : f32
    %53 = vector.broadcast %cst_21 : f32 to vector<128x32xf32>
    %54 = arith.maximumf %52, %53 : vector<128x32xf32>
    %55 = arith.truncf %54 : vector<128x32xf32> to vector<128x32xbf16>
    %c0_22 = arith.constant 0 : index
    %c0_23 = arith.constant 0 : index
    %56 = vector.load %arg9[%c0_22, %c0_23] : memref<32x128xbf16, #tpu.memory_space<vmem>>, vector<32x128xbf16>
    %cst_24 = arith.constant dense<0.000000e+00> : vector<128x128xf32>
    %57 = tpu.matmul %55, %56, %cst_24 {dimension_numbers = #tpu.dot_dimension_numbers<[1], [0], [0], [1], [0, 0, 1, 1], [], []>} : vector<128x32xbf16>, vector<32x128xbf16>, vector<128x128xf32> -> vector<128x128xf32>
    %58 = vector.extract_strided_slice %1 {offsets = [1, 0, 0], sizes = [8, 16, 128], strides = [1, 1, 1]} : vector<10x16x128xf32> to vector<8x16x128xf32>
    %59 = vector.shape_cast %58 : vector<8x16x128xf32> to vector<128x128xf32>
    %c0_25 = arith.constant 0 : index
    %c0_26 = arith.constant 0 : index
    %60 = vector.load %arg10[%c0_25, %c0_26] : memref<1x128xf32, #tpu.memory_space<vmem>>, vector<1x128xf32>
    %61 = vector.broadcast %60 : vector<1x128xf32> to vector<128x128xf32>
    %62 = arith.mulf %57, %61 : vector<128x128xf32>
    %c0_27 = arith.constant 0 : index
    %c0_28 = arith.constant 0 : index
    %63 = vector.load %arg11[%c0_27, %c0_28] : memref<1x128xf32, #tpu.memory_space<vmem>>, vector<1x128xf32>
    %64 = vector.broadcast %63 : vector<1x128xf32> to vector<128x128xf32>
    %65 = arith.addf %62, %64 : vector<128x128xf32>
    %66 = arith.addf %65, %59 : vector<128x128xf32>
    %cst_29 = arith.constant 0.000000e+00 : f32
    %67 = vector.broadcast %cst_29 : f32 to vector<128x128xf32>
    %68 = arith.maximumf %66, %67 : vector<128x128xf32>
    %69 = vector.shape_cast %68 : vector<128x128xf32> to vector<8x16x128xf32>
    %c0_30 = arith.constant 0 : index
    %c0_31 = arith.constant 0 : index
    %c0_32 = arith.constant 0 : index
    %c0_33 = arith.constant 0 : index
    %c0_34 = arith.constant 0 : index
    %70 = vector.load %arg12[%c0_30, %c0_31, %c0_32, %c0_33, %c0_34] : memref<1x1x8x16x128xf32, #tpu.memory_space<vmem>>, vector<1x1x8x16x128xf32>
    %71 = vector.shape_cast %70 : vector<1x1x8x16x128xf32> to vector<8x16x128xf32>
    %72 = vector.shape_cast %69 : vector<8x16x128xf32> to vector<1x1x8x16x128xf32>
    tpu.vector_store %arg12[%c0_30, %c0_31, %c0_32, %c0_33, %c0_34], %72 {strides = array<i32>} : memref<1x1x8x16x128xf32, #tpu.memory_space<vmem>>, vector<1x1x8x16x128xf32>,
    return
  }
  func.func @transform_0(%arg0: i32, %arg1: i32) -> (i32, i32, i32, i32, i32) {
    %c0_i32 = arith.constant 0 : i32
    %c0_i32_0 = arith.constant 0 : i32
    %c0_i32_1 = arith.constant 0 : i32
    %c0_i32_2 = arith.constant 0 : i32
    return %arg0, %arg1, %c0_i32, %c0_i32_0, %c0_i32_1 : i32, i32, i32, i32, i32
  }
  func.func @transform_1(%arg0: i32, %arg1: i32) -> (i32, i32) {
    %c0_i32 = arith.constant 0 : i32
    %c0_i32_0 = arith.constant 0 : i32
    %c0_i32_1 = arith.constant 0 : i32
    return %c0_i32, %c0_i32_0 : i32, i32
  }
  func.func @transform_2(%arg0: i32, %arg1: i32) -> (i32, i32) {
    %c0_i32 = arith.constant 0 : i32
    %c0_i32_0 = arith.constant 0 : i32
    %c0_i32_1 = arith.constant 0 : i32
    return %c0_i32, %c0_i32_0 : i32, i32
  }
  func.func @transform_3(%arg0: i32, %arg1: i32) -> (i32, i32) {
    %c0_i32 = arith.constant 0 : i32
    %c0_i32_0 = arith.constant 0 : i32
    %c0_i32_1 = arith.constant 0 : i32
    return %c0_i32, %c0_i32_0 : i32, i32
  }
  func.func @transform_4(%arg0: i32, %arg1: i32) -> (i32, i32) {
    %c0_i32 = arith.constant 0 : i32
    %c0_i32_0 = arith.constant 0 : i32
    %c0_i32_1 = arith.constant 0 : i32
    return %c0_i32, %c0_i32_0 : i32, i32
  }
  func.func @transform_5(%arg0: i32, %arg1: i32) -> (i32, i32) {
    %c0_i32 = arith.constant 0 : i32
    %c0_i32_0 = arith.constant 0 : i32
    %c0_i32_1 = arith.constant 0 : i32
    return %c0_i32, %c0_i32_0 : i32, i32
  }
  func.func @transform_6(%arg0: i32, %arg1: i32) -> (i32, i32) {
    %c0_i32 = arith.constant 0 : i32
    %c0_i32_0 = arith.constant 0 : i32
    %c0_i32_1 = arith.constant 0 : i32
    return %c0_i32, %c0_i32_0 : i32, i32
  }
  func.func @transform_7(%arg0: i32, %arg1: i32) -> (i32, i32) {
    %c0_i32 = arith.constant 0 : i32
    %c0_i32_0 = arith.constant 0 : i32
    %c0_i32_1 = arith.constant 0 : i32
    return %c0_i32, %c0_i32_0 : i32, i32
  }
  func.func @transform_8(%arg0: i32, %arg1: i32) -> (i32, i32) {
    %c0_i32 = arith.constant 0 : i32
    %c0_i32_0 = arith.constant 0 : i32
    %c0_i32_1 = arith.constant 0 : i32
    return %c0_i32, %c0_i32_0 : i32, i32
  }
  func.func @transform_9(%arg0: i32, %arg1: i32) -> (i32, i32) {
    %c0_i32 = arith.constant 0 : i32
    %c0_i32_0 = arith.constant 0 : i32
    %c0_i32_1 = arith.constant 0 : i32
    return %c0_i32, %c0_i32_0 : i32, i32
  }
  func.func @transform_10(%arg0: i32, %arg1: i32) -> (i32, i32, i32, i32, i32) {
    %c0_i32 = arith.constant 0 : i32
    %c0_i32_0 = arith.constant 0 : i32
    %c0_i32_1 = arith.constant 0 : i32
    %c0_i32_2 = arith.constant 0 : i32
    return %arg0, %arg1, %c0_i32, %c0_i32_0, %c0_i32_1 : i32, i32, i32, i32, i32
  }
}

</mosaic_0001>

<llo_original>
// kernel: bottleneck_forward.1
$region0: #{bottleneck_forward.1}
  #allocation0 [shape = 'u32[]', space=smem, size = 0x4, offset = 0x4, fixed_abs, tag = 'smem constant byte address 0x4 - core index']
  #allocation1 [shape = 'u32[144,128]{1,0:T(1,128)}', space=vmem, size = 0x12000, scoped, tag = 'internal scratch']
  %s0 = inlined_call_operand.vmem [shape: f32[2,2,10,16,128], index: 0, kind: input, shape index: {}]
  %s1 = inlined_call_operand.vmem [shape: bf16[128,32], index: 1, kind: input, shape index: {}]
  %s2 = inlined_call_operand.vmem [shape: f32[1,32], index: 2, kind: input, shape index: {}]
  %s3 = inlined_call_operand.vmem [shape: f32[1,32], index: 3, kind: input, shape index: {}]
  %s4 = inlined_call_operand.vmem [shape: bf16[288,32], index: 4, kind: input, shape index: {}]
  %s5 = inlined_call_operand.vmem [shape: f32[1,32], index: 5, kind: input, shape index: {}]
  %s6 = inlined_call_operand.vmem [shape: f32[1,32], index: 6, kind: input, shape index: {}]
  %s7 = inlined_call_operand.vmem [shape: bf16[32,128], index: 7, kind: input, shape index: {}]
  %s8 = inlined_call_operand.vmem [shape: f32[1,128], index: 8, kind: input, shape index: {}]
  %s9 = inlined_call_operand.vmem [shape: f32[1,128], index: 9, kind: input, shape index: {}]
  %s10 = inlined_call_operand.hbm [shape: f32[2,2,8,16,128], index: 10, kind: output, shape index: {}]
  %s11 = sld [smem:[#allocation0]]
  $region73: #{bottleneck_forward.1} parent=0
    _
  %s13 = ssub.s32 1, %s11
  %s14 = scalar_select 0, %s13, %s11
  $region1: #{bottleneck_forward.1} parent=0
    #allocation2 [shape = 'u8[131072]{0}', space=vmem, size = 0x20000, scoped, tag = 'output window, operand 0']
    #allocation3 [shape = 's32[2]{0}', space=sflag, size = 0x8, scoped, tag = 'scoped memory for bottleneck_forward.1']
    %15 = vsyncpa [#allocation3], 0
    %s16 = scalar_lea.sflag [#allocation3], 1
    %17 = vsyncpa %s16, 0
    loop: start=0, step=1, limit=6
    $region2: #{bottleneck_forward.1} parent=1 // loop_pre_header
      _
    $region3: #{bottleneck_forward.1} parent=1 // loop_header
      %s19 = sphi 0, %s23
      %p20 = scmp.ge.s32.totalorder %s19, 6
      %s26 = sphi 0, %s38
      %s27 = sphi 0, %s34
      %s28 = sphi 0, %s26
      %s29 = sphi 0, %s27
      %s30 = sphi 0, %s28
      %s31 = sphi 0, %s29
      %s43 = sphi 0, %s45
      %s46 = sphi 0, %s43
      %s47 = sphi 0, %s46
      %s63 = sphi 0, %s47
      %s67 = sphi 0, %s67
      %s69 = sphi 0, %s67
      %s70 = sphi 0, %s69
      %s84 = sphi 0, %s70
      %s88 = sphi 0, %s88
      %s90 = sphi 0, %s88
      %s91 = sphi 0, %s90
      %s105 = sphi 0, %s91
      %s109 = sphi 0, %s109
      %s111 = sphi 0, %s109
      %s112 = sphi 0, %s111
      %s126 = sphi 0, %s112
      %s130 = sphi 0, %s130
      %s132 = sphi 0, %s130
      %s133 = sphi 0, %s132
      %s147 = sphi 0, %s133
      %s151 = sphi 0, %s151
      %s153 = sphi 0, %s151
      %s154 = sphi 0, %s153
      %s168 = sphi 0, %s154
      %s172 = sphi 0, %s172
      %s174 = sphi 0, %s172
      %s175 = sphi 0, %s174
      %s189 = sphi 0, %s175
      %s193 = sphi 0, %s193
      %s195 = sphi 0, %s193
      %s196 = sphi 0, %s195
      %s210 = sphi 0, %s196
      %s214 = sphi 0, %s214
      %s216 = sphi 0, %s214
      %s217 = sphi 0, %s216
      %s231 = sphi 0, %s217
      %s235 = sphi 0, %s235
      %s237 = sphi 0, %s235
      %s238 = sphi 0, %s237
      %s252 = sphi 0, %s238
      %s260 = sphi 0, %s262
      %s263 = sphi 0, %s260
      %s264 = sphi 0, %s263
      %s280 = sphi 0, %s264
    $region4: #{bottleneck_forward.1} parent=1 // loop_header_branch
      %22 = sbr.rel (%p20) target = $region8
    $region5: #{bottleneck_forward.1} parent=1 // loop_body
      %s24 = ssub.s32 %s19, 1
      %s25 = ssub.s32 %s19, 2
      %s32 = sadd.s32 1, %s27
      %p33 = scmp.ge.s32.totalorder %s32, 2
      %s34 = scalar_select %p33, 0, %s32
      %s35 = sadd.s32 1, %s26
      %s36 = scalar_select %p33, %s35, %s26
      %p37 = scmp.ge.s32.totalorder %s36, 2
      %s38 = scalar_select %p37, 0, %s36
      %s39 = ssub.s32 %s26, %s38
      %s40 = ssub.s32 %s27, %s34
      %s41 = sor.u32 %s39, %s40
      %p42 = scmp.eq.s32.totalorder %s41, 0
      %s44 = sadd.s32 %s43, 1
      %s45 = scalar_select %p42, %s43, %s44
      %p48 = pneg %p42
      %p49 = scmp.eq.s32.totalorder %s19, 3
      %p50 = por %p48, %p49
      %p51 = scmp.ne.s32.totalorder %s43, %s46
      %p52 = scmp.eq.s32.totalorder %s19, 0
      %p53 = por %p51, %p52
      %p54 = scmp.ne.s32.totalorder %s43, %s46
      %p55 = scmp.eq.s32.totalorder %s24, 3
      %p56 = por %p54, %p55
      %p57 = scmp.ne.s32.totalorder %s46, %s47
      %p58 = scmp.eq.s32.totalorder %s24, 0
      %p59 = por %p57, %p58
      %p60 = scmp.ne.s32.totalorder %s46, %s47
      %p61 = scmp.eq.s32.totalorder %s25, 3
      %p62 = por %p60, %p61
      %p64 = scmp.ne.s32.totalorder %s47, %s63
      %p65 = scmp.eq.s32.totalorder %s25, 0
      %p66 = por %p64, %p65
      %s68 = sadd.s32 %s67, 1
      %p71 = scmp.eq.s32.totalorder %s19, 3
      %p72 = scmp.ne.s32.totalorder %s67, %s69
      %p73 = scmp.eq.s32.totalorder %s19, 0
      %p74 = por %p72, %p73
      %p75 = scmp.ne.s32.totalorder %s67, %s69
      %p76 = scmp.eq.s32.totalorder %s24, 3
      %p77 = por %p75, %p76
      %p78 = scmp.ne.s32.totalorder %s69, %s70
      %p79 = scmp.eq.s32.totalorder %s24, 0
      %p80 = por %p78, %p79
      %p81 = scmp.ne.s32.totalorder %s69, %s70
      %p82 = scmp.eq.s32.totalorder %s25, 3
      %p83 = por %p81, %p82
      %p85 = scmp.ne.s32.totalorder %s70, %s84
      %p86 = scmp.eq.s32.totalorder %s25, 0
      %p87 = por %p85, %p86
      %s89 = sadd.s32 %s88, 1
      %p92 = scmp.eq.s32.totalorder %s19, 3
      %p93 = scmp.ne.s32.totalorder %s88, %s90
      %p94 = scmp.eq.s32.totalorder %s19, 0
      %p95 = por %p93, %p94
      %p96 = scmp.ne.s32.totalorder %s88, %s90
      %p97 = scmp.eq.s32.totalorder %s24, 3
      %p98 = por %p96, %p97
      %p99 = scmp.ne.s32.totalorder %s90, %s91
      %p100 = scmp.eq.s32.totalorder %s24, 0
      %p101 = por %p99, %p100
      %p102 = scmp.ne.s32.totalorder %s90, %s91
      %p103 = scmp.eq.s32.totalorder %s25, 3
      %p104 = por %p102, %p103
      %p106 = scmp.ne.s32.totalorder %s91, %s105
      %p107 = scmp.eq.s32.totalorder %s25, 0
      %p108 = por %p106, %p107
      %s110 = sadd.s32 %s109, 1
      %p113 = scmp.eq.s32.totalorder %s19, 3
      %p114 = scmp.ne.s32.totalorder %s109, %s111
      %p115 = scmp.eq.s32.totalorder %s19, 0
      %p116 = por %p114, %p115
      %p117 = scmp.ne.s32.totalorder %s109, %s111
      %p118 = scmp.eq.s32.totalorder %s24, 3
      %p119 = por %p117, %p118
      %p120 = scmp.ne.s32.totalorder %s111, %s112
      %p121 = scmp.eq.s32.totalorder %s24, 0
      %p122 = por %p120, %p121
      %p123 = scmp.ne.s32.totalorder %s111, %s112
      %p124 = scmp.eq.s32.totalorder %s25, 3
      %p125 = por %p123, %p124
      %p127 = scmp.ne.s32.totalorder %s112, %s126
      %p128 = scmp.eq.s32.totalorder %s25, 0
      %p129 = por %p127, %p128
      %s131 = sadd.s32 %s130, 1
      %p134 = scmp.eq.s32.totalorder %s19, 3
      %p135 = scmp.ne.s32.totalorder %s130, %s132
      %p136 = scmp.eq.s32.totalorder %s19, 0
      %p137 = por %p135, %p136
      %p138 = scmp.ne.s32.totalorder %s130, %s132
      %p139 = scmp.eq.s32.totalorder %s24, 3
      %p140 = por %p138, %p139
      %p141 = scmp.ne.s32.totalorder %s132, %s133
      %p142 = scmp.eq.s32.totalorder %s24, 0
      %p143 = por %p141, %p142
      %p144 = scmp.ne.s32.totalorder %s132, %s133
      %p145 = scmp.eq.s32.totalorder %s25, 3
      %p146 = por %p144, %p145
      %p148 = scmp.ne.s32.totalorder %s133, %s147
      %p149 = scmp.eq.s32.totalorder %s25, 0
      %p150 = por %p148, %p149
      %s152 = sadd.s32 %s151, 1
      %p155 = scmp.eq.s32.totalorder %s19, 3
      %p156 = scmp.ne.s32.totalorder %s151, %s153
      %p157 = scmp.eq.s32.totalorder %s19, 0
      %p158 = por %p156, %p157
      %p159 = scmp.ne.s32.totalorder %s151, %s153
      %p160 = scmp.eq.s32.totalorder %s24, 3
      %p161 = por %p159, %p160
      %p162 = scmp.ne.s32.totalorder %s153, %s154
      %p163 = scmp.eq.s32.totalorder %s24, 0
      %p164 = por %p162, %p163
      %p165 = scmp.ne.s32.totalorder %s153, %s154
      %p166 = scmp.eq.s32.totalorder %s25, 3
      %p167 = por %p165, %p166
      %p169 = scmp.ne.s32.totalorder %s154, %s168
      %p170 = scmp.eq.s32.totalorder %s25, 0
      %p171 = por %p169, %p170
      %s173 = sadd.s32 %s172, 1
      %p176 = scmp.eq.s32.totalorder %s19, 3
      %p177 = scmp.ne.s32.totalorder %s172, %s174
      %p178 = scmp.eq.s32.totalorder %s19, 0
      %p179 = por %p177, %p178
      %p180 = scmp.ne.s32.totalorder %s172, %s174
      %p181 = scmp.eq.s32.totalorder %s24, 3
      %p182 = por %p180, %p181
      %p183 = scmp.ne.s32.totalorder %s174, %s175
      %p184 = scmp.eq.s32.totalorder %s24, 0
      %p185 = por %p183, %p184
      %p186 = scmp.ne.s32.totalorder %s174, %s175
      %p187 = scmp.eq.s32.totalorder %s25, 3
      %p188 = por %p186, %p187
      %p190 = scmp.ne.s32.totalorder %s175, %s189
      %p191 = scmp.eq.s32.totalorder %s25, 0
      %p192 = por %p190, %p191
      %s194 = sadd.s32 %s193, 1
      %p197 = scmp.eq.s32.totalorder %s19, 3
      %p198 = scmp.ne.s32.totalorder %s193, %s195
      %p199 = scmp.eq.s32.totalorder %s19, 0
      %p200 = por %p198, %p199
      %p201 = scmp.ne.s32.totalorder %s193, %s195
      %p202 = scmp.eq.s32.totalorder %s24, 3
      %p203 = por %p201, %p202
      %p204 = scmp.ne.s32.totalorder %s195, %s196
      %p205 = scmp.eq.s32.totalorder %s24, 0
      %p206 = por %p204, %p205
      %p207 = scmp.ne.s32.totalorder %s195, %s196
      %p208 = scmp.eq.s32.totalorder %s25, 3
      %p209 = por %p207, %p208
      %p211 = scmp.ne.s32.totalorder %s196, %s210
      %p212 = scmp.eq.s32.totalorder %s25, 0
      %p213 = por %p211, %p212
      %s215 = sadd.s32 %s214, 1
      %p218 = scmp.eq.s32.totalorder %s19, 3
      %p219 = scmp.ne.s32.totalorder %s214, %s216
      %p220 = scmp.eq.s32.totalorder %s19, 0
      %p221 = por %p219, %p220
      %p222 = scmp.ne.s32.totalorder %s214, %s216
      %p223 = scmp.eq.s32.totalorder %s24, 3
      %p224 = por %p222, %p223
      %p225 = scmp.ne.s32.totalorder %s216, %s217
      %p226 = scmp.eq.s32.totalorder %s24, 0
      %p227 = por %p225, %p226
      %p228 = scmp.ne.s32.totalorder %s216, %s217
      %p229 = scmp.eq.s32.totalorder %s25, 3
      %p230 = por %p228, %p229
      %p232 = scmp.ne.s32.totalorder %s217, %s231
      %p233 = scmp.eq.s32.totalorder %s25, 0
      %p234 = por %p232, %p233
      %s236 = sadd.s32 %s235, 1
      %p239 = scmp.eq.s32.totalorder %s19, 3
      %p240 = scmp.ne.s32.totalorder %s235, %s237
      %p241 = scmp.eq.s32.totalorder %s19, 0
      %p242 = por %p240, %p241
      %p243 = scmp.ne.s32.totalorder %s235, %s237
      %p244 = scmp.eq.s32.totalorder %s24, 3
      %p245 = por %p243, %p244
      %p246 = scmp.ne.s32.totalorder %s237, %s238
      %p247 = scmp.eq.s32.totalorder %s24, 0
      %p248 = por %p246, %p247
      %p249 = scmp.ne.s32.totalorder %s237, %s238
      %p250 = scmp.eq.s32.totalorder %s25, 3
      %p251 = por %p249, %p250
      %p253 = scmp.ne.s32.totalorder %s238, %s252
      %p254 = scmp.eq.s32.totalorder %s25, 0
      %p255 = por %p253, %p254
      %s256 = ssub.s32 %s26, %s38
      %s257 = ssub.s32 %s27, %s34
      %s258 = sor.u32 %s256, %s257
      %p259 = scmp.eq.s32.totalorder %s258, 0
      %s261 = sadd.s32 %s260, 1
      %s262 = scalar_select %p259, %s260, %s261
      %p265 = pneg %p259
      %p266 = scmp.eq.s32.totalorder %s19, 3
      %p267 = por %p265, %p266
      %p268 = scmp.ne.s32.totalorder %s260, %s263
      %p269 = scmp.eq.s32.totalorder %s19, 0
      %p270 = por %p268, %p269
      %p271 = scmp.ne.s32.totalorder %s260, %s263
      %p272 = scmp.eq.s32.totalorder %s24, 3
      %p273 = por %p271, %p272
      %p274 = scmp.ne.s32.totalorder %s263, %s264
      %p275 = scmp.eq.s32.totalorder %s24, 0
      %p276 = por %p274, %p275
      %p277 = scmp.ne.s32.totalorder %s263, %s264
      %p278 = scmp.eq.s32.totalorder %s25, 3
      %p279 = por %p277, %p278
      %p281 = scmp.ne.s32.totalorder %s264, %s280
      %p282 = scmp.eq.s32.totalorder %s25, 0
      %p283 = por %p281, %p282
      %p284 = scmp.le.s32.totalorder 1, %s19
      %p285 = scmp.lt.s32.totalorder %s19, 5
      %p286 = pnand %p284, %p285
      %p287 = pneg %p286
      // Predicated region
      $region9: #{bottleneck_forward.1} parent=5 // pred_check
        _
      $region10: #{bottleneck_forward.1} parent=5 // pred_check_branch
        %289 = sbr.rel (%p286) target = $region12
      $region11: #{bottleneck_forward.1} parent=5 // pred_region
        %s290 = ssub.s32 %s19, 1
        // Predicated region
        $region13: #{bottleneck_forward.1} parent=11 // pred_check
          %p291 = pneg %p80
        $region14: #{bottleneck_forward.1} parent=11 // pred_check_branch
          %293 = sbr.rel (%p291) target = $region16
        $region15: #{bottleneck_forward.1} parent=11 // pred_region
          _
        $region16: #{bottleneck_forward.1} parent=11 // pred_fallthru
          _
        // Predicated region
        $region17: #{bottleneck_forward.1} parent=11 // pred_check
          %p294 = pneg %p101
        $region18: #{bottleneck_forward.1} parent=11 // pred_check_branch
          %296 = sbr.rel (%p294) target = $region20
        $region19: #{bottleneck_forward.1} parent=11 // pred_region
          _
        $region20: #{bottleneck_forward.1} parent=11 // pred_fallthru
          _
        // Predicated region
        $region21: #{bottleneck_forward.1} parent=11 // pred_check
          %p297 = pneg %p122
        $region22: #{bottleneck_forward.1} parent=11 // pred_check_branch
          %299 = sbr.rel (%p297) target = $region24
        $region23: #{bottleneck_forward.1} parent=11 // pred_region
          _
        $region24: #{bottleneck_forward.1} parent=11 // pred_fallthru
          _
        // Predicated region
        $region25: #{bottleneck_forward.1} parent=11 // pred_check
          %p300 = pneg %p143
        $region26: #{bottleneck_forward.1} parent=11 // pred_check_branch
          %302 = sbr.rel (%p300) target = $region28
        $region27: #{bottleneck_forward.1} parent=11 // pred_region
          _
        $region28: #{bottleneck_forward.1} parent=11 // pred_fallthru
          _
        // Predicated region
        $region29: #{bottleneck_forward.1} parent=11 // pred_check
          %p303 = pneg %p164
        $region30: #{bottleneck_forward.1} parent=11 // pred_check_branch
          %305 = sbr.rel (%p303) target = $region32
        $region31: #{bottleneck_forward.1} parent=11 // pred_region
          _
        $region32: #{bottleneck_forward.1} parent=11 // pred_fallthru
          _
        // Predicated region
        $region33: #{bottleneck_forward.1} parent=11 // pred_check
          %p306 = pneg %p185
        $region34: #{bottleneck_forward.1} parent=11 // pred_check_branch
          %308 = sbr.rel (%p306) target = $region36
        $region35: #{bottleneck_forward.1} parent=11 // pred_region
          _
        $region36: #{bottleneck_forward.1} parent=11 // pred_fallthru
          _
        // Predicated region
        $region37: #{bottleneck_forward.1} parent=11 // pred_check
          %p309 = pneg %p206
        $region38: #{bottleneck_forward.1} parent=11 // pred_check_branch
          %311 = sbr.rel (%p309) target = $region40
        $region39: #{bottleneck_forward.1} parent=11 // pred_region
          _
        $region40: #{bottleneck_forward.1} parent=11 // pred_fallthru
          _
        // Predicated region
        $region41: #{bottleneck_forward.1} parent=11 // pred_check
          %p312 = pneg %p227
        $region42: #{bottleneck_forward.1} parent=11 // pred_check_branch
          %314 = sbr.rel (%p312) target = $region44
        $region43: #{bottleneck_forward.1} parent=11 // pred_region
          _
        $region44: #{bottleneck_forward.1} parent=11 // pred_fallthru
          _
        // Predicated region
        $region45: #{bottleneck_forward.1} parent=11 // pred_check
          %p315 = pneg %p248
        $region46: #{bottleneck_forward.1} parent=11 // pred_check_branch
          %317 = sbr.rel (%p315) target = $region48
        $region47: #{bottleneck_forward.1} parent=11 // pred_region
          _
        $region48: #{bottleneck_forward.1} parent=11 // pred_fallthru
          _
      $region12: #{bottleneck_forward.1} parent=5 // pred_fallthru
        _
      %p318 = scmp.lt.s32.totalorder %s19, 4
      // Predicated region
      $region49: #{bottleneck_forward.1} parent=5 // pred_check
        %p319 = pneg %p318
      $region50: #{bottleneck_forward.1} parent=5 // pred_check_branch
        %321 = sbr.rel (%p319) target = $region52
      $region51: #{bottleneck_forward.1} parent=5 // pred_region
        // Predicated region
        $region53: #{bottleneck_forward.1} parent=51 // pred_check
          %p322 = pneg %p53
        $region54: #{bottleneck_forward.1} parent=51 // pred_check_branch
          %324 = sbr.rel (%p322) target = $region56
        $region55: #{bottleneck_forward.1} parent=51 // pred_region
          %p325 = scmp.lt.s32.totalorder %s26, 1
          %s326 = scalar_select %p325, %s26, 1
          %p327 = scmp.lt.s32.totalorder %s27, 1
          %s328 = scalar_select %p327, %s27, 1
          %s329 = smul.addr %s328, 20
          %s330 = smul.addr %s326, 40
          %s331 = sadd.s32 %s329, %s330
          %s332 = smul.addr %s331, 8
          %s333 = scalar_lea.vmem %s0, %s332
        $region56: #{bottleneck_forward.1} parent=51 // pred_fallthru
          _
      $region52: #{bottleneck_forward.1} parent=5 // pred_fallthru
        _
      %p334 = scmp.le.s32.totalorder 1, %s19
      %p335 = scmp.lt.s32.totalorder %s19, 5
      %p336 = pnand %p334, %p335
      %p337 = pneg %p336
      // Predicated region
      $region57: #{bottleneck_forward.1} parent=5 // pred_check
        _
      $region58: #{bottleneck_forward.1} parent=5 // pred_check_branch
        %339 = sbr.rel (%p336) target = $region60
      $region59: #{bottleneck_forward.1} parent=5 // pred_region
        %s340 = ssub.s32 %s19, 1
        %p341 = scmp.lt.s32.totalorder %s28, 1
        %s342 = scalar_select %p341, %s28, 1
        %p343 = scmp.lt.s32.totalorder %s29, 1
        %s344 = scalar_select %p343, %s29, 1
        %s345 = smul.addr %s344, 20
        %s346 = smul.addr %s342, 40
        %s347 = sadd.s32 %s345, %s346
        %s348 = smul.addr %s347, 8
        %s349 = scalar_lea.vmem %s0, %s348
        %p350 = pneg %p59
        %p351 = pneg %p56
        %p352 = pneg %p80
        %p353 = pneg %p77
        %p354 = pneg %p101
        %p355 = pneg %p98
        %p356 = pneg %p122
        %p357 = pneg %p119
        %p358 = pneg %p143
        %p359 = pneg %p140
        %p360 = pneg %p164
        %p361 = pneg %p161
        %p362 = pneg %p185
        %p363 = pneg %p182
        %p364 = pneg %p206
        %p365 = pneg %p203
        %p366 = pneg %p227
        %p367 = pneg %p224
        %p368 = pneg %p248
        %p369 = pneg %p245
        %p370 = pneg %p276
        %p371 = pneg %p273
        %s372 = sand.u32 %s263, 1
        %s373 = scalar_lea.sflag [#allocation3], %s372
        %s374 = sand.u32 %s263, 1
        %s375 = smul.addr %s374, 128
        %s376 = scalar_lea.vmem [#allocation2], %s375
        %p377 = scmp.lt.s32.totalorder %s28, 1
        %s378 = scalar_select %p377, %s28, 1
        %p379 = scmp.lt.s32.totalorder %s29, 1
        %s380 = scalar_select %p379, %s29, 1
        %s381 = smul.addr %s380, 20
        %s382 = smul.addr %s378, 40
        %s383 = sadd.s32 %s381, %s382
        %s384 = smul.addr %s383, 8
        %s385 = scalar_lea.vmem %s0, %s384
        %v387 = vld [vmem:[%s385] sm:$0xff]
        %v388 = vld [vmem:[%s385 + $0x8] sm:$0xff]
        %v389 = vld [vmem:[%s385 + $0x10] sm:$0xff]
        %v390 = vld [vmem:[%s385 + $0x18] sm:$0xff]
        %v391 = vld [vmem:[%s385 + $0x20] sm:$0xff]
        %v392 = vld [vmem:[%s385 + $0x28] sm:$0xff]
        %v393 = vld [vmem:[%s385 + $0x30] sm:$0xff]
        %v394 = vld [vmem:[%s385 + $0x38] sm:$0xff]
        %v395 = vld [vmem:[%s385 + $0x40] sm:$0xff]
        %v396 = vld [vmem:[%s385 + $0x48] sm:$0xff]
        %v397 = vld [vmem:[%s385 + $0x50] sm:$0xff]
        %v398 = vld [vmem:[%s385 + $0x58] sm:$0xff]
        %v399 = vld [vmem:[%s385 + $0x60] sm:$0xff]
        %v400 = vld [vmem:[%s385 + $0x68] sm:$0xff]
        %v401 = vld [vmem:[%s385 + $0x70] sm:$0xff]
        %v402 = vld [vmem:[%s385 + $0x78] sm:$0xff]
        %v403 = vld [vmem:[%s385 + $0x80] sm:$0xff]
        %v404 = vld [vmem:[%s385 + $0x88] sm:$0xff]
        %v405 = vld [vmem:[%s385 + $0x90] sm:$0xff]
        %v406 = vld [vmem:[%s385 + $0x98] sm:$0xff]
        %v407 = vpack.c.bf16 %v388, %v387
        %v408 = vpack.c.bf16 %v390, %v389
        %v409 = vpack.c.bf16 %v392, %v391
        %v410 = vpack.c.bf16 %v394, %v393
        %v411 = vpack.c.bf16 %v396, %v395
        %v412 = vpack.c.bf16 %v398, %v397
        %v413 = vpack.c.bf16 %v400, %v399
        %v414 = vpack.c.bf16 %v402, %v401
        %v415 = vpack.c.bf16 %v404, %v403
        %v416 = vpack.c.bf16 %v406, %v405
        %v417 = vld [vmem:[%s1] sm:$0xf]
        %v418 = vld [vmem:[%s1 + $0x4] sm:$0xf]
        %v419 = vld [vmem:[%s1 + $0x8] sm:$0xf]
        %v420 = vld [vmem:[%s1 + $0xc] sm:$0xf]
        %v421 = vld [vmem:[%s1 + $0x10] sm:$0xf]
        %v422 = vld [vmem:[%s1 + $0x14] sm:$0xf]
        %v423 = vld [vmem:[%s1 + $0x18] sm:$0xf]
        %v424 = vld [vmem:[%s1 + $0x1c] sm:$0xf]
        %v425 = vld [vmem:[%s1 + $0x20] sm:$0xf]
        %v426 = vld [vmem:[%s1 + $0x24] sm:$0xf]
        %v427 = vld [vmem:[%s1 + $0x28] sm:$0xf]
        %v428 = vld [vmem:[%s1 + $0x2c] sm:$0xf]
        %v429 = vld [vmem:[%s1 + $0x30] sm:$0xf]
        %v430 = vld [vmem:[%s1 + $0x34] sm:$0xf]
        %v431 = vld [vmem:[%s1 + $0x38] sm:$0xf]
        %v432 = vld [vmem:[%s1 + $0x3c] sm:$0xf]
        %v449 = vunpack.c.l.b16 %v417
        %v450 = vunpack.c.l.b16 %v418
        %v451 = vunpack.c.l.b16 %v419
        %v452 = vunpack.c.l.b16 %v420
        %v453 = vunpack.c.l.b16 %v421
        %v454 = vunpack.c.l.b16 %v422
        %v455 = vunpack.c.l.b16 %v423
        %v456 = vunpack.c.l.b16 %v424
        %v457 = vunpack.c.l.b16 %v425
        %v458 = vunpack.c.l.b16 %v426
        %v459 = vunpack.c.l.b16 %v427
        %v460 = vunpack.c.l.b16 %v428
        %v461 = vunpack.c.l.b16 %v429
        %v462 = vunpack.c.l.b16 %v430
        %v463 = vunpack.c.l.b16 %v431
        %v464 = vunpack.c.l.b16 %v432
        %v465 = vpack.c.b16 %v450, %v449
        %v466 = vpack.c.b16 %v452, %v451
        %v467 = vpack.c.b16 %v454, %v453
        %v468 = vpack.c.b16 %v456, %v455
        %v469 = vpack.c.b16 %v458, %v457
        %v470 = vpack.c.b16 %v460, %v459
        %v471 = vpack.c.b16 %v462, %v461
        %v472 = vpack.c.b16 %v464, %v463
        %481 = vmatprep.subr.bf16.mxu0 0
        %482 = vmatpush1.bf16.msra.mxu0 %v465
        %483 = vmatprep.subr.bf16.mxu0 0
        %484 = vmatpush1.bf16.msra.mxu0 %v466
        %485 = vmatprep.subr.bf16.mxu0 0
        %486 = vmatpush1.bf16.msra.mxu0 %v467
        %487 = vmatprep.subr.bf16.mxu0 0
        %488 = vmatpush1.bf16.msra.mxu0 %v468
        %489 = vmatprep.subr.bf16.mxu0 0
        %490 = vmatpush1.bf16.msra.mxu0 %v469
        %491 = vmatprep.subr.bf16.mxu0 0
        %492 = vmatpush1.bf16.msra.mxu0 %v470
        %493 = vmatprep.subr.bf16.mxu0 0
        %494 = vmatpush1.bf16.msra.mxu0 %v471
        %495 = vmatprep.subr.bf16.mxu0 0
        %496 = vmatpush1.bf16.msra.mxu0 %v472
        %497 = vmatprep.subr.bf16.mxu0 0
        %498 = vmatpush1.bf16.msra.mxu0 0
        %499 = vmatprep.subr.bf16.mxu0 0
        %500 = vmatpush1.bf16.msra.mxu0 0
        %501 = vmatprep.subr.bf16.mxu0 0
        %502 = vmatpush1.bf16.msra.mxu0 0
        %503 = vmatprep.subr.bf16.mxu0 0
        %504 = vmatpush1.bf16.msra.mxu0 0
        %505 = vmatprep.subr.bf16.mxu0 0
        %506 = vmatpush1.bf16.msra.mxu0 0
        %507 = vmatprep.subr.bf16.mxu0 0
        %508 = vmatpush1.bf16.msra.mxu0 0
        %509 = vmatprep.subr.bf16.mxu0 0
        %510 = vmatpush1.bf16.msra.mxu0 0
        %511 = vmatprep.subr.bf16.mxu0 0
        %512 = vmatpush1.bf16.msra.mxu0 0
        %513 = vmatprep.mubr.bf16.mxu0 0
        %514 = vmatmul.mubr.bf16.gmra.mrb[0].mxu0 %v407
        %v515 = vpop.f32.mrb[0].mxu0
        %v516 = vadd.f32 0.0, %v515
        %v517 = vpop.f32.mrb[0].mxu0
        %v518 = vpop.f32.mrb[0].mxu0
        %v519 = vadd.f32 0.0, %v518
        %v520 = vpop.f32.mrb[0].mxu0
        %521 = vmatprep.mubr.bf16.mxu0 0
        %522 = vmatmul.mubr.bf16.gmra.mrb[0].mxu0 %v408
        %v523 = vpop.f32.mrb[0].mxu0
        %v524 = vadd.f32 0.0, %v523
        %v525 = vpop.f32.mrb[0].mxu0
        %v526 = vpop.f32.mrb[0].mxu0
        %v527 = vadd.f32 0.0, %v526
        %v528 = vpop.f32.mrb[0].mxu0
        %529 = vmatprep.mubr.bf16.mxu0 0
        %530 = vmatmul.mubr.bf16.gmra.mrb[0].mxu0 %v409
        %v531 = vpop.f32.mrb[0].mxu0
        %v532 = vadd.f32 0.0, %v531
        %v533 = vpop.f32.mrb[0].mxu0
        %v534 = vpop.f32.mrb[0].mxu0
        %v535 = vadd.f32 0.0, %v534
        %v536 = vpop.f32.mrb[0].mxu0
        %537 = vmatprep.mubr.bf16.mxu0 0
        %538 = vmatmul.mubr.bf16.gmra.mrb[0].mxu0 %v410
        %v539 = vpop.f32.mrb[0].mxu0
        %v540 = vadd.f32 0.0, %v539
        %v541 = vpop.f32.mrb[0].mxu0
        %v542 = vpop.f32.mrb[0].mxu0
        %v543 = vadd.f32 0.0, %v542
        %v544 = vpop.f32.mrb[0].mxu0
        %545 = vmatprep.mubr.bf16.mxu0 0
        %546 = vmatmul.mubr.bf16.gmra.mrb[0].mxu0 %v411
        %v547 = vpop.f32.mrb[0].mxu0
        %v548 = vadd.f32 0.0, %v547
        %v549 = vpop.f32.mrb[0].mxu0
        %v550 = vpop.f32.mrb[0].mxu0
        %v551 = vadd.f32 0.0, %v550
        %v552 = vpop.f32.mrb[0].mxu0
        %553 = vmatprep.mubr.bf16.mxu0 0
        %554 = vmatmul.mubr.bf16.gmra.mrb[0].mxu0 %v412
        %v555 = vpop.f32.mrb[0].mxu0
        %v556 = vadd.f32 0.0, %v555
        %v557 = vpop.f32.mrb[0].mxu0
        %v558 = vpop.f32.mrb[0].mxu0
        %v559 = vadd.f32 0.0, %v558
        %v560 = vpop.f32.mrb[0].mxu0
        %561 = vmatprep.mubr.bf16.mxu0 0
        %562 = vmatmul.mubr.bf16.gmra.mrb[0].mxu0 %v413
        %v563 = vpop.f32.mrb[0].mxu0
        %v564 = vadd.f32 0.0, %v563
        %v565 = vpop.f32.mrb[0].mxu0
        %v566 = vpop.f32.mrb[0].mxu0
        %v567 = vadd.f32 0.0, %v566
        %v568 = vpop.f32.mrb[0].mxu0
        %569 = vmatprep.mubr.bf16.mxu0 0
        %570 = vmatmul.mubr.bf16.gmra.mrb[0].mxu0 %v414
        %v571 = vpop.f32.mrb[0].mxu0
        %v572 = vadd.f32 0.0, %v571
        %v573 = vpop.f32.mrb[0].mxu0
        %v574 = vpop.f32.mrb[0].mxu0
        %v575 = vadd.f32 0.0, %v574
        %v576 = vpop.f32.mrb[0].mxu0
        %577 = vmatprep.mubr.bf16.mxu0 0
        %578 = vmatmul.mubr.bf16.gmra.mrb[0].mxu0 %v415
        %v579 = vpop.f32.mrb[0].mxu0
        %v580 = vadd.f32 0.0, %v579
        %v581 = vpop.f32.mrb[0].mxu0
        %v582 = vpop.f32.mrb[0].mxu0
        %v583 = vadd.f32 0.0, %v582
        %v584 = vpop.f32.mrb[0].mxu0
        %585 = vmatprep.mubr.bf16.mxu0 0
        %586 = vmatmul.mubr.bf16.gmra.mrb[0].mxu0 %v416
        %v587 = vpop.f32.mrb[0].mxu0
        %v588 = vadd.f32 0.0, %v587
        %v589 = vpop.f32.mrb[0].mxu0
        %v590 = vpop.f32.mrb[0].mxu0
        %v591 = vadd.f32 0.0, %v590
        %v592 = vpop.f32.mrb[0].mxu0
        %593 = vdwg.mxu0
        %v594 = vld [vmem:[%s2] sm:$0x1]
        %v596 = vlaneseq
        %v597 = vshrl.u32 %v596, 7
        %v598 = vsub.s32 0, %v597
        %v599 = vrot.slane %v594, %v598
        %v601 = vmul.f32 %v516, %v599
        %v602 = vmul.f32 %v519, %v599
        %v603 = vmul.f32 %v524, %v599
        %v604 = vmul.f32 %v527, %v599
        %v605 = vmul.f32 %v532, %v599
        %v606 = vmul.f32 %v535, %v599
        %v607 = vmul.f32 %v540, %v599
        %v608 = vmul.f32 %v543, %v599
        %v609 = vmul.f32 %v548, %v599
        %v610 = vmul.f32 %v551, %v599
        %v611 = vmul.f32 %v556, %v599
        %v612 = vmul.f32 %v559, %v599
        %v613 = vmul.f32 %v564, %v599
        %v614 = vmul.f32 %v567, %v599
        %v615 = vmul.f32 %v572, %v599
        %v616 = vmul.f32 %v575, %v599
        %v617 = vmul.f32 %v580, %v599
        %v618 = vmul.f32 %v583, %v599
        %v619 = vmul.f32 %v588, %v599
        %v620 = vmul.f32 %v591, %v599
        %v621 = vld [vmem:[%s3] sm:$0x1]
        %v623 = vlaneseq
        %v624 = vshrl.u32 %v623, 7
        %v625 = vsub.s32 0, %v624
        %v626 = vrot.slane %v621, %v625
        %v628 = vadd.f32 %v601, %v626
        %v629 = vadd.f32 %v602, %v626
        %v630 = vadd.f32 %v603, %v626
        %v631 = vadd.f32 %v604, %v626
        %v632 = vadd.f32 %v605, %v626
        %v633 = vadd.f32 %v606, %v626
        %v634 = vadd.f32 %v607, %v626
        %v635 = vadd.f32 %v608, %v626
        %v636 = vadd.f32 %v609, %v626
        %v637 = vadd.f32 %v610, %v626
        %v638 = vadd.f32 %v611, %v626
        %v639 = vadd.f32 %v612, %v626
        %v640 = vadd.f32 %v613, %v626
        %v641 = vadd.f32 %v614, %v626
        %v642 = vadd.f32 %v615, %v626
        %v643 = vadd.f32 %v616, %v626
        %v644 = vadd.f32 %v617, %v626
        %v645 = vadd.f32 %v618, %v626
        %v646 = vadd.f32 %v619, %v626
        %v647 = vadd.f32 %v620, %v626
        %v648 = vmax.f32 %v628, 0.0
        %v649 = vmax.f32 %v629, 0.0
        %v650 = vmax.f32 %v630, 0.0
        %v651 = vmax.f32 %v631, 0.0
        %v652 = vmax.f32 %v632, 0.0
        %v653 = vmax.f32 %v633, 0.0
        %v654 = vmax.f32 %v634, 0.0
        %v655 = vmax.f32 %v635, 0.0
        %v656 = vmax.f32 %v636, 0.0
        %v657 = vmax.f32 %v637, 0.0
        %v658 = vmax.f32 %v638, 0.0
        %v659 = vmax.f32 %v639, 0.0
        %v660 = vmax.f32 %v640, 0.0
        %v661 = vmax.f32 %v641, 0.0
        %v662 = vmax.f32 %v642, 0.0
        %v663 = vmax.f32 %v643, 0.0
        %v664 = vmax.f32 %v644, 0.0
        %v665 = vmax.f32 %v645, 0.0
        %v666 = vmax.f32 %v646, 0.0
        %v667 = vmax.f32 %v647, 0.0
        %p668 = scmp.gt.s32.totalorder %s29, 0
        %s669 = scalar_select %p668, 1, 0
        %v670 = vstv %s669
        %vm671 = vcmp.eq.s32.totalorder %v670, 1
        %p672 = scmp.lt.s32.totalorder %s29, 1
        %s673 = scalar_select %p672, 1, 0
        %v674 = vstv %s673
        %vm675 = vcmp.eq.s32.totalorder %v674, 1
        %v676 = vsel %vm671, 1, 0
        %v677 = vsel %vm675, 1, 0
        %vm678 = vcmp.eq.s32.totalorder %v676, 1
        %vm679 = vcmp.eq.s32.totalorder %v677, 1
        %v680 = vsel %vm678, %v648, 0.0
        %v681 = vsel %vm678, %v649, 0.0
        %v682 = vsel 1, %v650, 0.0
        %v683 = vsel 1, %v651, 0.0
        %v684 = vsel 1, %v652, 0.0
        %v685 = vsel 1, %v653, 0.0
        %v686 = vsel 1, %v654, 0.0
        %v687 = vsel 1, %v655, 0.0
        %v688 = vsel 1, %v656, 0.0
        %v689 = vsel 1, %v657, 0.0
        %v690 = vsel 1, %v658, 0.0
        %v691 = vsel 1, %v659, 0.0
        %v692 = vsel 1, %v660, 0.0
        %v693 = vsel 1, %v661, 0.0
        %v694 = vsel 1, %v662, 0.0
        %v695 = vsel 1, %v663, 0.0
        %v696 = vsel 1, %v664, 0.0
        %v697 = vsel 1, %v665, 0.0
        %v698 = vsel %vm679, %v666, 0.0
        %v699 = vsel %vm679, %v667, 0.0
        %vm720 = vcmask 1040384
        %v721 = vrot.slane %v680, 7
        %v722 = vrot.slane %v681, 7
        %v723 = vsel %vm720, %v721, %v722
        %v724 = vrot.slane %v682, 7
        %v725 = vrot.slane %v683, 7
        %v726 = vsel %vm720, %v724, %v725
        %v727 = vrot.slane %v684, 7
        %v728 = vrot.slane %v685, 7
        %v729 = vsel %vm720, %v727, %v728
        %v730 = vrot.slane %v686, 7
        %v731 = vrot.slane %v687, 7
        %v732 = vsel %vm720, %v730, %v731
        %v733 = vrot.slane %v688, 7
        %v734 = vrot.slane %v689, 7
        %v735 = vsel %vm720, %v733, %v734
        %v736 = vrot.slane %v690, 7
        %v737 = vrot.slane %v691, 7
        %v738 = vsel %vm720, %v736, %v737
        %v739 = vrot.slane %v692, 7
        %v740 = vrot.slane %v693, 7
        %v741 = vsel %vm720, %v739, %v740
        %v742 = vrot.slane %v694, 7
        %v743 = vrot.slane %v695, 7
        %v744 = vsel %vm720, %v742, %v743
        %v745 = vrot.slane %v696, 7
        %v746 = vrot.slane %v697, 7
        %v747 = vsel %vm720, %v745, %v746
        %v748 = vrot.slane %v698, 7
        %v749 = vrot.slane %v699, 7
        %v750 = vsel %vm720, %v748, %v749
        %v779 = vsel %vm720, 0.0, %v721
        %v780 = vsel %vm720, 0.0, %v724
        %v781 = vsel %vm720, 0.0, %v727
        %v782 = vsel %vm720, 0.0, %v730
        %v783 = vsel %vm720, 0.0, %v733
        %v784 = vsel %vm720, 0.0, %v736
        %v785 = vsel %vm720, 0.0, %v739
        %v786 = vsel %vm720, 0.0, %v742
        %v787 = vsel %vm720, 0.0, %v745
        %v788 = vsel %vm720, 0.0, %v748
        %v789 = vsel %vm720, %v722, 0.0
        %v790 = vsel %vm720, %v725, 0.0
        %v791 = vsel %vm720, %v728, 0.0
        %v792 = vsel %vm720, %v731, 0.0
        %v793 = vsel %vm720, %v734, 0.0
        %v794 = vsel %vm720, %v737, 0.0
        %v795 = vsel %vm720, %v740, 0.0
        %v796 = vsel %vm720, %v743, 0.0
        %v797 = vsel %vm720, %v746, 0.0
        %v798 = vsel %vm720, %v749, 0.0
        %vm815 = vcmask 1046528
        %v816 = vrot.slane %v779, 1
        %v817 = vrot.slane %v723, 1
        %v818 = vsel %vm815, %v816, %v817
        %v819 = vrot.slane %v789, 1
        %v820 = vsel %vm815, %v817, %v819
        %v821 = vrot.slane %v780, 1
        %v822 = vrot.slane %v726, 1
        %v823 = vsel %vm815, %v821, %v822
        %v824 = vrot.slane %v790, 1
        %v825 = vsel %vm815, %v822, %v824
        %v826 = vrot.slane %v781, 1
        %v827 = vrot.slane %v729, 1
        %v828 = vsel %vm815, %v826, %v827
        %v829 = vrot.slane %v791, 1
        %v830 = vsel %vm815, %v827, %v829
        %v831 = vrot.slane %v782, 1
        %v832 = vrot.slane %v732, 1
        %v833 = vsel %vm815, %v831, %v832
        %v834 = vrot.slane %v792, 1
        %v835 = vsel %vm815, %v832, %v834
        %v836 = vrot.slane %v783, 1
        %v837 = vrot.slane %v735, 1
        %v838 = vsel %vm815, %v836, %v837
        %v839 = vrot.slane %v793, 1
        %v840 = vsel %vm815, %v837, %v839
        %v841 = vrot.slane %v784, 1
        %v842 = vrot.slane %v738, 1
        %v843 = vsel %vm815, %v841, %v842
        %v844 = vrot.slane %v794, 1
        %v845 = vsel %vm815, %v842, %v844
        %v846 = vrot.slane %v785, 1
        %v847 = vrot.slane %v741, 1
        %v848 = vsel %vm815, %v846, %v847
        %v849 = vrot.slane %v795, 1
        %v850 = vsel %vm815, %v847, %v849
        %v851 = vrot.slane %v786, 1
        %v852 = vrot.slane %v744, 1
        %v853 = vsel %vm815, %v851, %v852
        %v854 = vrot.slane %v796, 1
        %v855 = vsel %vm815, %v852, %v854
        %856 = vrot.lane.b32.xlu0 %v818, 32
        %v857 = vpop.permute.xlu0 %856
        %858 = vrot.lane.b32.xlu0 %v820, 32
        %v859 = vpop.permute.xlu0 %858
        %860 = vrot.lane.b32.xlu0 %v823, 32
        %v861 = vpop.permute.xlu0 %860
        %862 = vrot.lane.b32.xlu0 %v825, 32
        %v863 = vpop.permute.xlu0 %862
        %864 = vrot.lane.b32.xlu0 %v828, 32
        %v865 = vpop.permute.xlu0 %864
        %866 = vrot.lane.b32.xlu0 %v830, 32
        %v867 = vpop.permute.xlu0 %866
        %868 = vrot.lane.b32.xlu0 %v833, 32
        %v869 = vpop.permute.xlu0 %868
        %870 = vrot.lane.b32.xlu0 %v835, 32
        %v871 = vpop.permute.xlu0 %870
        %872 = vrot.lane.b32.xlu0 %v838, 32
        %v873 = vpop.permute.xlu0 %872
        %874 = vrot.lane.b32.xlu0 %v840, 32
        %v875 = vpop.permute.xlu0 %874
        %876 = vrot.lane.b32.xlu0 %v843, 32
        %v877 = vpop.permute.xlu0 %876
        %878 = vrot.lane.b32.xlu0 %v845, 32
        %v879 = vpop.permute.xlu0 %878
        %880 = vrot.lane.b32.xlu0 %v848, 32
        %v881 = vpop.permute.xlu0 %880
        %882 = vrot.lane.b32.xlu0 %v850, 32
        %v883 = vpop.permute.xlu0 %882
        %884 = vrot.lane.b32.xlu0 %v853, 32
        %v885 = vpop.permute.xlu0 %884
        %886 = vrot.lane.b32.xlu0 %v855, 32
        %v887 = vpop.permute.xlu0 %886
        %vm904 = vcmask 1045504
        %v905 = vrot.slane %v779, 2
        %v906 = vrot.slane %v723, 2
        %v907 = vsel %vm904, %v905, %v906
        %v908 = vrot.slane %v789, 2
        %v909 = vsel %vm904, %v906, %v908
        %v910 = vrot.slane %v780, 2
        %v911 = vrot.slane %v726, 2
        %v912 = vsel %vm904, %v910, %v911
        %v913 = vrot.slane %v790, 2
        %v914 = vsel %vm904, %v911, %v913
        %v915 = vrot.slane %v781, 2
        %v916 = vrot.slane %v729, 2
        %v917 = vsel %vm904, %v915, %v916
        %v918 = vrot.slane %v791, 2
        %v919 = vsel %vm904, %v916, %v918
        %v920 = vrot.slane %v782, 2
        %v921 = vrot.slane %v732, 2
        %v922 = vsel %vm904, %v920, %v921
        %v923 = vrot.slane %v792, 2
        %v924 = vsel %vm904, %v921, %v923
        %v925 = vrot.slane %v783, 2
        %v926 = vrot.slane %v735, 2
        %v927 = vsel %vm904, %v925, %v926
        %v928 = vrot.slane %v793, 2
        %v929 = vsel %vm904, %v926, %v928
        %v930 = vrot.slane %v784, 2
        %v931 = vrot.slane %v738, 2
        %v932 = vsel %vm904, %v930, %v931
        %v933 = vrot.slane %v794, 2
        %v934 = vsel %vm904, %v931, %v933
        %v935 = vrot.slane %v785, 2
        %v936 = vrot.slane %v741, 2
        %v937 = vsel %vm904, %v935, %v936
        %v938 = vrot.slane %v795, 2
        %v939 = vsel %vm904, %v936, %v938
        %v940 = vrot.slane %v786, 2
        %v941 = vrot.slane %v744, 2
        %v942 = vsel %vm904, %v940, %v941
        %v943 = vrot.slane %v796, 2
        %v944 = vsel %vm904, %v941, %v943
        %945 = vrot.lane.b32.xlu0 %v907, 64
        %v946 = vpop.permute.xlu0 %945
        %947 = vrot.lane.b32.xlu0 %v909, 64
        %v948 = vpop.permute.xlu0 %947
        %949 = vrot.lane.b32.xlu0 %v912, 64
        %v950 = vpop.permute.xlu0 %949
        %951 = vrot.lane.b32.xlu0 %v914, 64
        %v952 = vpop.permute.xlu0 %951
        %953 = vrot.lane.b32.xlu0 %v917, 64
        %v954 = vpop.permute.xlu0 %953
        %955 = vrot.lane.b32.xlu0 %v919, 64
        %v956 = vpop.permute.xlu0 %955
        %957 = vrot.lane.b32.xlu0 %v922, 64
        %v958 = vpop.permute.xlu0 %957
        %959 = vrot.lane.b32.xlu0 %v924, 64
        %v960 = vpop.permute.xlu0 %959
        %961 = vrot.lane.b32.xlu0 %v927, 64
        %v962 = vpop.permute.xlu0 %961
        %963 = vrot.lane.b32.xlu0 %v929, 64
        %v964 = vpop.permute.xlu0 %963
        %965 = vrot.lane.b32.xlu0 %v932, 64
        %v966 = vpop.permute.xlu0 %965
        %967 = vrot.lane.b32.xlu0 %v934, 64
        %v968 = vpop.permute.xlu0 %967
        %969 = vrot.lane.b32.xlu0 %v937, 64
        %v970 = vpop.permute.xlu0 %969
        %971 = vrot.lane.b32.xlu0 %v939, 64
        %v972 = vpop.permute.xlu0 %971
        %973 = vrot.lane.b32.xlu0 %v942, 64
        %v974 = vpop.permute.xlu0 %973
        %975 = vrot.lane.b32.xlu0 %v944, 64
        %v976 = vpop.permute.xlu0 %975
        %994 = vrot.lane.b32.xlu0 %v780, 96
        %v995 = vpop.permute.xlu0 %994
        %996 = vrot.lane.b32.xlu0 %v726, 96
        %v997 = vpop.permute.xlu0 %996
        %998 = vrot.lane.b32.xlu0 %v781, 96
        %v999 = vpop.permute.xlu0 %998
        %1000 = vrot.lane.b32.xlu0 %v729, 96
        %v1001 = vpop.permute.xlu0 %1000
        %1002 = vrot.lane.b32.xlu0 %v782, 96
        %v1003 = vpop.permute.xlu0 %1002
        %1004 = vrot.lane.b32.xlu0 %v732, 96
        %v1005 = vpop.permute.xlu0 %1004
        %1006 = vrot.lane.b32.xlu0 %v783, 96
        %v1007 = vpop.permute.xlu0 %1006
        %1008 = vrot.lane.b32.xlu0 %v735, 96
        %v1009 = vpop.permute.xlu0 %1008
        %1010 = vrot.lane.b32.xlu0 %v784, 96
        %v1011 = vpop.permute.xlu0 %1010
        %1012 = vrot.lane.b32.xlu0 %v738, 96
        %v1013 = vpop.permute.xlu0 %1012
        %1014 = vrot.lane.b32.xlu0 %v785, 96
        %v1015 = vpop.permute.xlu0 %1014
        %1016 = vrot.lane.b32.xlu0 %v741, 96
        %v1017 = vpop.permute.xlu0 %1016
        %1018 = vrot.lane.b32.xlu0 %v786, 96
        %v1019 = vpop.permute.xlu0 %1018
        %1020 = vrot.lane.b32.xlu0 %v744, 96
        %v1021 = vpop.permute.xlu0 %1020
        %1022 = vrot.lane.b32.xlu0 %v787, 96
        %v1023 = vpop.permute.xlu0 %1022
        %1024 = vrot.lane.b32.xlu0 %v747, 96
        %v1025 = vpop.permute.xlu0 %1024
        %v1043 = vrot.slane %v787, 1
        %v1044 = vrot.slane %v747, 1
        %v1045 = vsel %vm815, %v1043, %v1044
        %v1046 = vrot.slane %v797, 1
        %v1047 = vsel %vm815, %v1044, %v1046
        %v1064 = vrot.slane %v787, 2
        %v1065 = vrot.slane %v747, 2
        %v1066 = vsel %vm904, %v1064, %v1065
        %v1067 = vrot.slane %v797, 2
        %v1068 = vsel %vm904, %v1065, %v1067
        %1069 = vrot.lane.b32.xlu0 %v912, 32
        %v1070 = vpop.permute.xlu0 %1069
        %1071 = vrot.lane.b32.xlu0 %v914, 32
        %v1072 = vpop.permute.xlu0 %1071
        %1073 = vrot.lane.b32.xlu0 %v917, 32
        %v1074 = vpop.permute.xlu0 %1073
        %1075 = vrot.lane.b32.xlu0 %v919, 32
        %v1076 = vpop.permute.xlu0 %1075
        %1077 = vrot.lane.b32.xlu0 %v922, 32
        %v1078 = vpop.permute.xlu0 %1077
        %1079 = vrot.lane.b32.xlu0 %v924, 32
        %v1080 = vpop.permute.xlu0 %1079
        %1081 = vrot.lane.b32.xlu0 %v927, 32
        %v1082 = vpop.permute.xlu0 %1081
        %1083 = vrot.lane.b32.xlu0 %v929, 32
        %v1084 = vpop.permute.xlu0 %1083
        %1085 = vrot.lane.b32.xlu0 %v932, 32
        %v1086 = vpop.permute.xlu0 %1085
        %1087 = vrot.lane.b32.xlu0 %v934, 32
        %v1088 = vpop.permute.xlu0 %1087
        %1089 = vrot.lane.b32.xlu0 %v937, 32
        %v1090 = vpop.permute.xlu0 %1089
        %1091 = vrot.lane.b32.xlu0 %v939, 32
        %v1092 = vpop.permute.xlu0 %1091
        %1093 = vrot.lane.b32.xlu0 %v942, 32
        %v1094 = vpop.permute.xlu0 %1093
        %1095 = vrot.lane.b32.xlu0 %v944, 32
        %v1096 = vpop.permute.xlu0 %1095
        %1097 = vrot.lane.b32.xlu0 %v1066, 32
        %v1098 = vpop.permute.xlu0 %1097
        %1099 = vrot.lane.b32.xlu0 %v1068, 32
        %v1100 = vpop.permute.xlu0 %1099
        %1118 = vrot.lane.b32.xlu0 %v781, 64
        %v1119 = vpop.permute.xlu0 %1118
        %1120 = vrot.lane.b32.xlu0 %v729, 64
        %v1121 = vpop.permute.xlu0 %1120
        %1122 = vrot.lane.b32.xlu0 %v782, 64
        %v1123 = vpop.permute.xlu0 %1122
        %1124 = vrot.lane.b32.xlu0 %v732, 64
        %v1125 = vpop.permute.xlu0 %1124
        %1126 = vrot.lane.b32.xlu0 %v783, 64
        %v1127 = vpop.permute.xlu0 %1126
        %1128 = vrot.lane.b32.xlu0 %v735, 64
        %v1129 = vpop.permute.xlu0 %1128
        %1130 = vrot.lane.b32.xlu0 %v784, 64
        %v1131 = vpop.permute.xlu0 %1130
        %1132 = vrot.lane.b32.xlu0 %v738, 64
        %v1133 = vpop.permute.xlu0 %1132
        %1134 = vrot.lane.b32.xlu0 %v785, 64
        %v1135 = vpop.permute.xlu0 %1134
        %1136 = vrot.lane.b32.xlu0 %v741, 64
        %v1137 = vpop.permute.xlu0 %1136
        %1138 = vrot.lane.b32.xlu0 %v786, 64
        %v1139 = vpop.permute.xlu0 %1138
        %1140 = vrot.lane.b32.xlu0 %v744, 64
        %v1141 = vpop.permute.xlu0 %1140
        %1142 = vrot.lane.b32.xlu0 %v787, 64
        %v1143 = vpop.permute.xlu0 %1142
        %1144 = vrot.lane.b32.xlu0 %v747, 64
        %v1145 = vpop.permute.xlu0 %1144
        %1146 = vrot.lane.b32.xlu0 %v788, 64
        %v1147 = vpop.permute.xlu0 %1146
        %1148 = vrot.lane.b32.xlu0 %v750, 64
        %v1149 = vpop.permute.xlu0 %1148
        %v1167 = vrot.slane %v788, 1
        %v1168 = vrot.slane %v750, 1
        %v1169 = vsel %vm815, %v1167, %v1168
        %v1170 = vrot.slane %v798, 1
        %v1171 = vsel %vm815, %v1168, %v1170
        %1172 = vrot.lane.b32.xlu0 %v828, 96
        %v1173 = vpop.permute.xlu0 %1172
        %1174 = vrot.lane.b32.xlu0 %v830, 96
        %v1175 = vpop.permute.xlu0 %1174
        %1176 = vrot.lane.b32.xlu0 %v833, 96
        %v1177 = vpop.permute.xlu0 %1176
        %1178 = vrot.lane.b32.xlu0 %v835, 96
        %v1179 = vpop.permute.xlu0 %1178
        %1180 = vrot.lane.b32.xlu0 %v838, 96
        %v1181 = vpop.permute.xlu0 %1180
        %1182 = vrot.lane.b32.xlu0 %v840, 96
        %v1183 = vpop.permute.xlu0 %1182
        %1184 = vrot.lane.b32.xlu0 %v843, 96
        %v1185 = vpop.permute.xlu0 %1184
        %1186 = vrot.lane.b32.xlu0 %v845, 96
        %v1187 = vpop.permute.xlu0 %1186
        %1188 = vrot.lane.b32.xlu0 %v848, 96
        %v1189 = vpop.permute.xlu0 %1188
        %1190 = vrot.lane.b32.xlu0 %v850, 96
        %v1191 = vpop.permute.xlu0 %1190
        %1192 = vrot.lane.b32.xlu0 %v853, 96
        %v1193 = vpop.permute.xlu0 %1192
        %1194 = vrot.lane.b32.xlu0 %v855, 96
        %v1195 = vpop.permute.xlu0 %1194
        %1196 = vrot.lane.b32.xlu0 %v1045, 96
        %v1197 = vpop.permute.xlu0 %1196
        %1198 = vrot.lane.b32.xlu0 %v1047, 96
        %v1199 = vpop.permute.xlu0 %1198
        %1200 = vrot.lane.b32.xlu0 %v1169, 96
        %v1201 = vpop.permute.xlu0 %1200
        %1202 = vrot.lane.b32.xlu0 %v1171, 96
        %v1203 = vpop.permute.xlu0 %1202
        %v1220 = vrot.slane %v788, 2
        %v1221 = vrot.slane %v750, 2
        %v1222 = vsel %vm904, %v1220, %v1221
        %v1223 = vrot.slane %v798, 2
        %v1224 = vsel %vm904, %v1221, %v1223
        %vm1241 = vcmask 261120
        %v1242 = vsel %vm1241, %v779, %v857
        %v1243 = vsel %vm1241, %v723, %v859
        %v1244 = vsel %vm1241, %v780, %v861
        %v1245 = vsel %vm1241, %v726, %v863
        %v1246 = vsel %vm1241, %v781, %v865
        %v1247 = vsel %vm1241, %v729, %v867
        %v1248 = vsel %vm1241, %v782, %v869
        %v1249 = vsel %vm1241, %v732, %v871
        %v1250 = vsel %vm1241, %v783, %v873
        %v1251 = vsel %vm1241, %v735, %v875
        %v1252 = vsel %vm1241, %v784, %v877
        %v1253 = vsel %vm1241, %v738, %v879
        %v1254 = vsel %vm1241, %v785, %v881
        %v1255 = vsel %vm1241, %v741, %v883
        %v1256 = vsel %vm1241, %v786, %v885
        %v1257 = vsel %vm1241, %v744, %v887
        %vm1258 = vcmask 523264
        %v1259 = vsel %vm1258, %v1242, %v946
        %v1260 = vsel %vm1258, %v1243, %v948
        %v1261 = vsel %vm1258, %v1244, %v950
        %v1262 = vsel %vm1258, %v1245, %v952
        %v1263 = vsel %vm1258, %v1246, %v954
        %v1264 = vsel %vm1258, %v1247, %v956
        %v1265 = vsel %vm1258, %v1248, %v958
        %v1266 = vsel %vm1258, %v1249, %v960
        %v1267 = vsel %vm1258, %v1250, %v962
        %v1268 = vsel %vm1258, %v1251, %v964
        %v1269 = vsel %vm1258, %v1252, %v966
        %v1270 = vsel %vm1258, %v1253, %v968
        %v1271 = vsel %vm1258, %v1254, %v970
        %v1272 = vsel %vm1258, %v1255, %v972
        %v1273 = vsel %vm1258, %v1256, %v974
        %v1274 = vsel %vm1258, %v1257, %v976
        %vm1275 = vcmask 785408
        %v1276 = vsel %vm1275, %v1259, %v995
        %v1277 = vsel %vm1275, %v1260, %v997
        %v1278 = vsel %vm1275, %v1261, %v999
        %v1279 = vsel %vm1275, %v1262, %v1001
        %v1280 = vsel %vm1275, %v1263, %v1003
        %v1281 = vsel %vm1275, %v1264, %v1005
        %v1282 = vsel %vm1275, %v1265, %v1007
        %v1283 = vsel %vm1275, %v1266, %v1009
        %v1284 = vsel %vm1275, %v1267, %v1011
        %v1285 = vsel %vm1275, %v1268, %v1013
        %v1286 = vsel %vm1275, %v1269, %v1015
        %v1287 = vsel %vm1275, %v1270, %v1017
        %v1288 = vsel %vm1275, %v1271, %v1019
        %v1289 = vsel %vm1275, %v1272, %v1021
        %v1290 = vsel %vm1275, %v1273, %v1023
        %v1291 = vsel %vm1275, %v1274, %v1025
        %v1292 = vsel %vm1241, %v823, %v1070
        %v1293 = vsel %vm1241, %v825, %v1072
        %v1294 = vsel %vm1241, %v828, %v1074
        %v1295 = vsel %vm1241, %v830, %v1076
        %v1296 = vsel %vm1241, %v833, %v1078
        %v1297 = vsel %vm1241, %v835, %v1080
        %v1298 = vsel %vm1241, %v838, %v1082
        %v1299 = vsel %vm1241, %v840, %v1084
        %v1300 = vsel %vm1241, %v843, %v1086
        %v1301 = vsel %vm1241, %v845, %v1088
        %v1302 = vsel %vm1241, %v848, %v1090
        %v1303 = vsel %vm1241, %v850, %v1092
        %v1304 = vsel %vm1241, %v853, %v1094
        %v1305 = vsel %vm1241, %v855, %v1096
        %v1306 = vsel %vm1241, %v1045, %v1098
        %v1307 = vsel %vm1241, %v1047, %v1100
        %v1308 = vsel %vm1258, %v1292, %v1119
        %v1309 = vsel %vm1258, %v1293, %v1121
        %v1310 = vsel %vm1258, %v1294, %v1123
        %v1311 = vsel %vm1258, %v1295, %v1125
        %v1312 = vsel %vm1258, %v1296, %v1127
        %v1313 = vsel %vm1258, %v1297, %v1129
        %v1314 = vsel %vm1258, %v1298, %v1131
        %v1315 = vsel %vm1258, %v1299, %v1133
        %v1316 = vsel %vm1258, %v1300, %v1135
        %v1317 = vsel %vm1258, %v1301, %v1137
        %v1318 = vsel %vm1258, %v1302, %v1139
        %v1319 = vsel %vm1258, %v1303, %v1141
        %v1320 = vsel %vm1258, %v1304, %v1143
        %v1321 = vsel %vm1258, %v1305, %v1145
        %v1322 = vsel %vm1258, %v1306, %v1147
        %v1323 = vsel %vm1258, %v1307, %v1149
        %v1324 = vsel %vm1275, %v1308, %v1173
        %v1325 = vsel %vm1275, %v1309, %v1175
        %v1326 = vsel %vm1275, %v1310, %v1177
        %v1327 = vsel %vm1275, %v1311, %v1179
        %v1328 = vsel %vm1275, %v1312, %v1181
        %v1329 = vsel %vm1275, %v1313, %v1183
        %v1330 = vsel %vm1275, %v1314, %v1185
        %v1331 = vsel %vm1275, %v1315, %v1187
        %v1332 = vsel %vm1275, %v1316, %v1189
        %v1333 = vsel %vm1275, %v1317, %v1191
        %v1334 = vsel %vm1275, %v1318, %v1193
        %v1335 = vsel %vm1275, %v1319, %v1195
        %v1336 = vsel %vm1275, %v1320, %v1197
        %v1337 = vsel %vm1275, %v1321, %v1199
        %v1338 = vsel %vm1275, %v1322, %v1201
        %v1339 = vsel %vm1275, %v1323, %v1203
        %v1340 = vpack.c.bf16 %v1277, %v1276
        %v1341 = vpack.c.bf16 %v1325, %v1324
        %v1342 = vpack.c.bf16 %v919, %v917
        %v1343 = vpack.c.bf16 %v1279, %v1278
        %v1344 = vpack.c.bf16 %v1327, %v1326
        %v1345 = vpack.c.bf16 %v924, %v922
        %v1346 = vpack.c.bf16 %v1281, %v1280
        %v1347 = vpack.c.bf16 %v1329, %v1328
        %v1348 = vpack.c.bf16 %v929, %v927
        %v1349 = vpack.c.bf16 %v1283, %v1282
        %v1350 = vpack.c.bf16 %v1331, %v1330
        %v1351 = vpack.c.bf16 %v934, %v932
        %v1352 = vpack.c.bf16 %v1285, %v1284
        %v1353 = vpack.c.bf16 %v1333, %v1332
        %v1354 = vpack.c.bf16 %v939, %v937
        %v1355 = vpack.c.bf16 %v1287, %v1286
        %v1356 = vpack.c.bf16 %v1335, %v1334
        %v1357 = vpack.c.bf16 %v944, %v942
        %v1358 = vpack.c.bf16 %v1289, %v1288
        %v1359 = vpack.c.bf16 %v1337, %v1336
        %v1360 = vpack.c.bf16 %v1068, %v1066
        %v1361 = vpack.c.bf16 %v1291, %v1290
        %v1362 = vpack.c.bf16 %v1339, %v1338
        %v1363 = vpack.c.bf16 %v1224, %v1222
        %v1364 = vld [vmem:[%s4] sm:$0xf]
        %v1365 = vld [vmem:[%s4 + $0x4] sm:$0xf]
        %v1366 = vld [vmem:[%s4 + $0x8] sm:$0xf]
        %v1367 = vld [vmem:[%s4 + $0xc] sm:$0xf]
        %v1368 = vld [vmem:[%s4 + $0x10] sm:$0xf]
        %v1369 = vld [vmem:[%s4 + $0x14] sm:$0xf]
        %v1370 = vld [vmem:[%s4 + $0x18] sm:$0xf]
        %v1371 = vld [vmem:[%s4 + $0x1c] sm:$0xf]
        %v1372 = vld [vmem:[%s4 + $0x20] sm:$0xf]
        %v1373 = vld [vmem:[%s4 + $0x24] sm:$0xf]
        %v1374 = vld [vmem:[%s4 + $0x28] sm:$0xf]
        %v1375 = vld [vmem:[%s4 + $0x2c] sm:$0xf]
        %v1376 = vld [vmem:[%s4 + $0x30] sm:$0xf]
        %v1377 = vld [vmem:[%s4 + $0x34] sm:$0xf]
        %v1378 = vld [vmem:[%s4 + $0x38] sm:$0xf]
        %v1379 = vld [vmem:[%s4 + $0x3c] sm:$0xf]
        %v1380 = vld [vmem:[%s4 + $0x40] sm:$0xf]
        %v1381 = vld [vmem:[%s4 + $0x44] sm:$0xf]
        %v1382 = vld [vmem:[%s4 + $0x48] sm:$0xf]
        %v1383 = vld [vmem:[%s4 + $0x4c] sm:$0xf]
        %v1384 = vld [vmem:[%s4 + $0x50] sm:$0xf]
        %v1385 = vld [vmem:[%s4 + $0x54] sm:$0xf]
        %v1386 = vld [vmem:[%s4 + $0x58] sm:$0xf]
        %v1387 = vld [vmem:[%s4 + $0x5c] sm:$0xf]
        %v1388 = vld [vmem:[%s4 + $0x60] sm:$0xf]
        %v1389 = vld [vmem:[%s4 + $0x64] sm:$0xf]
        %v1390 = vld [vmem:[%s4 + $0x68] sm:$0xf]
        %v1391 = vld [vmem:[%s4 + $0x6c] sm:$0xf]
        %v1392 = vld [vmem:[%s4 + $0x70] sm:$0xf]
        %v1393 = vld [vmem:[%s4 + $0x74] sm:$0xf]
        %v1394 = vld [vmem:[%s4 + $0x78] sm:$0xf]
        %v1395 = vld [vmem:[%s4 + $0x7c] sm:$0xf]
        %v1396 = vld [vmem:[%s4 + $0x80] sm:$0xf]
        %v1397 = vld [vmem:[%s4 + $0x84] sm:$0xf]
        %v1398 = vld [vmem:[%s4 + $0x88] sm:$0xf]
        %v1399 = vld [vmem:[%s4 + $0x8c] sm:$0xf]
        %v1436 = vunpack.c.l.b16 %v1364
        %v1437 = vunpack.c.l.b16 %v1365
        %v1438 = vunpack.c.l.b16 %v1366
        %v1439 = vunpack.c.l.b16 %v1367
        %v1440 = vunpack.c.l.b16 %v1368
        %v1441 = vunpack.c.l.b16 %v1369
        %v1442 = vunpack.c.l.b16 %v1370
        %v1443 = vunpack.c.l.b16 %v1371
        %v1444 = vunpack.c.l.b16 %v1372
        %v1445 = vunpack.c.l.b16 %v1373
        %v1446 = vunpack.c.l.b16 %v1374
        %v1447 = vunpack.c.l.b16 %v1375
        %v1448 = vunpack.c.l.b16 %v1376
        %v1449 = vunpack.c.l.b16 %v1377
        %v1450 = vunpack.c.l.b16 %v1378
        %v1451 = vunpack.c.l.b16 %v1379
        %v1452 = vunpack.c.l.b16 %v1380
        %v1453 = vunpack.c.l.b16 %v1381
        %v1454 = vunpack.c.l.b16 %v1382
        %v1455 = vunpack.c.l.b16 %v1383
        %v1456 = vunpack.c.l.b16 %v1384
        %v1457 = vunpack.c.l.b16 %v1385
        %v1458 = vunpack.c.l.b16 %v1386
        %v1459 = vunpack.c.l.b16 %v1387
        %v1460 = vunpack.c.l.b16 %v1388
        %v1461 = vunpack.c.l.b16 %v1389
        %v1462 = vunpack.c.l.b16 %v1390
        %v1463 = vunpack.c.l.b16 %v1391
        %v1464 = vunpack.c.l.b16 %v1392
        %v1465 = vunpack.c.l.b16 %v1393
        %v1466 = vunpack.c.l.b16 %v1394
        %v1467 = vunpack.c.l.b16 %v1395
        %v1468 = vunpack.c.l.b16 %v1396
        %v1469 = vunpack.c.l.b16 %v1397
        %v1470 = vunpack.c.l.b16 %v1398
        %v1471 = vunpack.c.l.b16 %v1399
        %v1472 = vpack.c.b16 %v1437, %v1436
        %v1473 = vpack.c.b16 %v1439, %v1438
        %v1474 = vpack.c.b16 %v1441, %v1440
        %v1475 = vpack.c.b16 %v1443, %v1442
        %v1476 = vpack.c.b16 %v1445, %v1444
        %v1477 = vpack.c.b16 %v1447, %v1446
        %v1478 = vpack.c.b16 %v1449, %v1448
        %v1479 = vpack.c.b16 %v1451, %v1450
        %v1480 = vpack.c.b16 %v1453, %v1452
        %v1481 = vpack.c.b16 %v1455, %v1454
        %v1482 = vpack.c.b16 %v1457, %v1456
        %v1483 = vpack.c.b16 %v1459, %v1458
        %v1484 = vpack.c.b16 %v1461, %v1460
        %v1485 = vpack.c.b16 %v1463, %v1462
        %v1486 = vpack.c.b16 %v1465, %v1464
        %v1487 = vpack.c.b16 %v1467, %v1466
        %v1488 = vpack.c.b16 %v1469, %v1468
        %v1489 = vpack.c.b16 %v1471, %v1470
        %v1509 = vsel %vm1241, %v1342, 0
        %v1512 = vsel %vm1241, %v1345, 0
        %v1515 = vsel %vm1241, %v1348, 0
        %v1518 = vsel %vm1241, %v1351, 0
        %v1521 = vsel %vm1241, %v1354, 0
        %v1524 = vsel %vm1241, %v1357, 0
        %v1527 = vsel %vm1241, %v1360, 0
        %v1530 = vsel %vm1241, %v1363, 0
        %1532 = vmatprep.subr.bf16.mxu0 0
        %1533 = vmatpush1.bf16.msra.mxu0 %v1472
        %1534 = vmatprep.subr.bf16.mxu0 0
        %1535 = vmatpush1.bf16.msra.mxu0 %v1473
        %1536 = vmatprep.subr.bf16.mxu0 0
        %1537 = vmatpush1.bf16.msra.mxu0 %v1474
        %1538 = vmatprep.subr.bf16.mxu0 0
        %1539 = vmatpush1.bf16.msra.mxu0 %v1475
        %1540 = vmatprep.subr.bf16.mxu0 0
        %1541 = vmatpush1.bf16.msra.mxu0 %v1476
        %1542 = vmatprep.subr.bf16.mxu0 0
        %1543 = vmatpush1.bf16.msra.mxu0 %v1477
        %1544 = vmatprep.subr.bf16.mxu0 0
        %1545 = vmatpush1.bf16.msra.mxu0 %v1478
        %1546 = vmatprep.subr.bf16.mxu0 0
        %1547 = vmatpush1.bf16.msra.mxu0 %v1479
        %1548 = vmatprep.subr.bf16.mxu0 0
        %1549 = vmatpush1.bf16.msra.mxu0 %v1480
        %1550 = vmatprep.subr.bf16.mxu0 0
        %1551 = vmatpush1.bf16.msra.mxu0 %v1481
        %1552 = vmatprep.subr.bf16.mxu0 0
        %1553 = vmatpush1.bf16.msra.mxu0 %v1482
        %1554 = vmatprep.subr.bf16.mxu0 0
        %1555 = vmatpush1.bf16.msra.mxu0 %v1483
        %1556 = vmatprep.subr.bf16.mxu0 0
        %1557 = vmatpush1.bf16.msra.mxu0 %v1484
        %1558 = vmatprep.subr.bf16.mxu0 0
        %1559 = vmatpush1.bf16.msra.mxu0 %v1485
        %1560 = vmatprep.subr.bf16.mxu0 0
        %1561 = vmatpush1.bf16.msra.mxu0 %v1486
        %1562 = vmatprep.subr.bf16.mxu0 0
        %1563 = vmatpush1.bf16.msra.mxu0 %v1487
        %1564 = vmatprep.mubr.bf16.mxu0 %v1341
        %1565 = vmatmul.mubr.bf16.gmra.mrb[0].mxu0 %v1340
        %v1566 = vpop.f32.mrb[0].mxu0
        %v1567 = vadd.f32 0.0, %v1566
        %v1568 = vpop.f32.mrb[0].mxu0
        %v1569 = vpop.f32.mrb[0].mxu0
        %v1570 = vadd.f32 0.0, %v1569
        %v1571 = vpop.f32.mrb[0].mxu0
        %1572 = vmatprep.mubr.bf16.mxu0 %v1344
        %1573 = vmatmul.mubr.bf16.gmra.mrb[0].mxu0 %v1343
        %v1574 = vpop.f32.mrb[0].mxu0
        %v1575 = vadd.f32 0.0, %v1574
        %v1576 = vpop.f32.mrb[0].mxu0
        %v1577 = vpop.f32.mrb[0].mxu0
        %v1578 = vadd.f32 0.0, %v1577
        %v1579 = vpop.f32.mrb[0].mxu0
        %1580 = vmatprep.mubr.bf16.mxu0 %v1347
        %1581 = vmatmul.mubr.bf16.gmra.mrb[0].mxu0 %v1346
        %v1582 = vpop.f32.mrb[0].mxu0
        %v1583 = vadd.f32 0.0, %v1582
        %v1584 = vpop.f32.mrb[0].mxu0
        %v1585 = vpop.f32.mrb[0].mxu0
        %v1586 = vadd.f32 0.0, %v1585
        %v1587 = vpop.f32.mrb[0].mxu0
        %1588 = vmatprep.mubr.bf16.mxu0 %v1350
        %1589 = vmatmul.mubr.bf16.gmra.mrb[0].mxu0 %v1349
        %v1590 = vpop.f32.mrb[0].mxu0
        %v1591 = vadd.f32 0.0, %v1590
        %v1592 = vpop.f32.mrb[0].mxu0
        %v1593 = vpop.f32.mrb[0].mxu0
        %v1594 = vadd.f32 0.0, %v1593
        %v1595 = vpop.f32.mrb[0].mxu0
        %1596 = vmatprep.mubr.bf16.mxu0 %v1353
        %1597 = vmatmul.mubr.bf16.gmra.mrb[0].mxu0 %v1352
        %v1598 = vpop.f32.mrb[0].mxu0
        %v1599 = vadd.f32 0.0, %v1598
        %v1600 = vpop.f32.mrb[0].mxu0
        %v1601 = vpop.f32.mrb[0].mxu0
        %v1602 = vadd.f32 0.0, %v1601
        %v1603 = vpop.f32.mrb[0].mxu0
        %1604 = vmatprep.mubr.bf16.mxu0 %v1356
        %1605 = vmatmul.mubr.bf16.gmra.mrb[0].mxu0 %v1355
        %v1606 = vpop.f32.mrb[0].mxu0
        %v1607 = vadd.f32 0.0, %v1606
        %v1608 = vpop.f32.mrb[0].mxu0
        %v1609 = vpop.f32.mrb[0].mxu0
        %v1610 = vadd.f32 0.0, %v1609
        %v1611 = vpop.f32.mrb[0].mxu0
        %1612 = vmatprep.mubr.bf16.mxu0 %v1359
        %1613 = vmatmul.mubr.bf16.gmra.mrb[0].mxu0 %v1358
        %v1614 = vpop.f32.mrb[0].mxu0
        %v1615 = vadd.f32 0.0, %v1614
        %v1616 = vpop.f32.mrb[0].mxu0
        %v1617 = vpop.f32.mrb[0].mxu0
        %v1618 = vadd.f32 0.0, %v1617
        %v1619 = vpop.f32.mrb[0].mxu0
        %1620 = vmatprep.mubr.bf16.mxu0 %v1362
        %1621 = vmatmul.mubr.bf16.gmra.mrb[0].mxu0 %v1361
        %v1622 = vpop.f32.mrb[0].mxu0
        %v1623 = vadd.f32 0.0, %v1622
        %v1624 = vpop.f32.mrb[0].mxu0
        %v1625 = vpop.f32.mrb[0].mxu0
        %v1626 = vadd.f32 0.0, %v1625
        %v1627 = vpop.f32.mrb[0].mxu0
        %1628 = vdwg.mxu0
        %1629 = vmatprep.subr.bf16.mxu0 0
        %1630 = vmatpush1.bf16.msra.mxu0 %v1488
        %1631 = vmatprep.subr.bf16.mxu0 0
        %1632 = vmatpush1.bf16.msra.mxu0 %v1489
        %1633 = vmatprep.subr.bf16.mxu0 0
        %1634 = vmatpush1.bf16.msra.mxu0 0
        %1635 = vmatprep.subr.bf16.mxu0 0
        %1636 = vmatpush1.bf16.msra.mxu0 0
        %1637 = vmatprep.subr.bf16.mxu0 0
        %1638 = vmatpush1.bf16.msra.mxu0 0
        %1639 = vmatprep.subr.bf16.mxu0 0
        %1640 = vmatpush1.bf16.msra.mxu0 0
        %1641 = vmatprep.subr.bf16.mxu0 0
        %1642 = vmatpush1.bf16.msra.mxu0 0
        %1643 = vmatprep.subr.bf16.mxu0 0
        %1644 = vmatpush1.bf16.msra.mxu0 0
        %1645 = vmatprep.subr.bf16.mxu0 0
        %1646 = vmatpush1.bf16.msra.mxu0 0
        %1647 = vmatprep.subr.bf16.mxu0 0
        %1648 = vmatpush1.bf16.msra.mxu0 0
        %1649 = vmatprep.subr.bf16.mxu0 0
        %1650 = vmatpush1.bf16.msra.mxu0 0
        %1651 = vmatprep.subr.bf16.mxu0 0
        %1652 = vmatpush1.bf16.msra.mxu0 0
        %1653 = vmatprep.subr.bf16.mxu0 0
        %1654 = vmatpush1.bf16.msra.mxu0 0
        %1655 = vmatprep.subr.bf16.mxu0 0
        %1656 = vmatpush1.bf16.msra.mxu0 0
        %1657 = vmatprep.subr.bf16.mxu0 0
        %1658 = vmatpush1.bf16.msra.mxu0 0
        %1659 = vmatprep.subr.bf16.mxu0 0
        %1660 = vmatpush1.bf16.msra.mxu0 0
        %1661 = vmatprep.mubr.bf16.mxu0 0
        %1662 = vmatmul.mubr.bf16.gmra.mrb[0].mxu0 %v1509
        %v1663 = vpop.f32.mrb[0].mxu0
        %v1664 = vadd.f32 %v1567, %v1663
        %v1665 = vpop.f32.mrb[0].mxu0
        %v1666 = vpop.f32.mrb[0].mxu0
        %v1667 = vadd.f32 %v1570, %v1666
        %v1668 = vpop.f32.mrb[0].mxu0
        %1669 = vmatprep.mubr.bf16.mxu0 0
        %1670 = vmatmul.mubr.bf16.gmra.mrb[0].mxu0 %v1512
        %v1671 = vpop.f32.mrb[0].mxu0
        %v1672 = vadd.f32 %v1575, %v1671
        %v1673 = vpop.f32.mrb[0].mxu0
        %v1674 = vpop.f32.mrb[0].mxu0
        %v1675 = vadd.f32 %v1578, %v1674
        %v1676 = vpop.f32.mrb[0].mxu0
        %1677 = vmatprep.mubr.bf16.mxu0 0
        %1678 = vmatmul.mubr.bf16.gmra.mrb[0].mxu0 %v1515
        %v1679 = vpop.f32.mrb[0].mxu0
        %v1680 = vadd.f32 %v1583, %v1679
        %v1681 = vpop.f32.mrb[0].mxu0
        %v1682 = vpop.f32.mrb[0].mxu0
        %v1683 = vadd.f32 %v1586, %v1682
        %v1684 = vpop.f32.mrb[0].mxu0
        %1685 = vmatprep.mubr.bf16.mxu0 0
        %1686 = vmatmul.mubr.bf16.gmra.mrb[0].mxu0 %v1518
        %v1687 = vpop.f32.mrb[0].mxu0
        %v1688 = vadd.f32 %v1591, %v1687
        %v1689 = vpop.f32.mrb[0].mxu0
        %v1690 = vpop.f32.mrb[0].mxu0
        %v1691 = vadd.f32 %v1594, %v1690
        %v1692 = vpop.f32.mrb[0].mxu0
        %1693 = vmatprep.mubr.bf16.mxu0 0
        %1694 = vmatmul.mubr.bf16.gmra.mrb[0].mxu0 %v1521
        %v1695 = vpop.f32.mrb[0].mxu0
        %v1696 = vadd.f32 %v1599, %v1695
        %v1697 = vpop.f32.mrb[0].mxu0
        %v1698 = vpop.f32.mrb[0].mxu0
        %v1699 = vadd.f32 %v1602, %v1698
        %v1700 = vpop.f32.mrb[0].mxu0
        %1701 = vmatprep.mubr.bf16.mxu0 0
        %1702 = vmatmul.mubr.bf16.gmra.mrb[0].mxu0 %v1524
        %v1703 = vpop.f32.mrb[0].mxu0
        %v1704 = vadd.f32 %v1607, %v1703
        %v1705 = vpop.f32.mrb[0].mxu0
        %v1706 = vpop.f32.mrb[0].mxu0
        %v1707 = vadd.f32 %v1610, %v1706
        %v1708 = vpop.f32.mrb[0].mxu0
        %1709 = vmatprep.mubr.bf16.mxu0 0
        %1710 = vmatmul.mubr.bf16.gmra.mrb[0].mxu0 %v1527
        %v1711 = vpop.f32.mrb[0].mxu0
        %v1712 = vadd.f32 %v1615, %v1711
        %v1713 = vpop.f32.mrb[0].mxu0
        %v1714 = vpop.f32.mrb[0].mxu0
        %v1715 = vadd.f32 %v1618, %v1714
        %v1716 = vpop.f32.mrb[0].mxu0
        %1717 = vmatprep.mubr.bf16.mxu0 0
        %1718 = vmatmul.mubr.bf16.gmra.mrb[0].mxu0 %v1530
        %v1719 = vpop.f32.mrb[0].mxu0
        %v1720 = vadd.f32 %v1623, %v1719
        %v1721 = vpop.f32.mrb[0].mxu0
        %v1722 = vpop.f32.mrb[0].mxu0
        %v1723 = vadd.f32 %v1626, %v1722
        %v1724 = vpop.f32.mrb[0].mxu0
        %1725 = vdwg.mxu0
        %v1726 = vld [vmem:[%s5] sm:$0x1]
        %v1728 = vlaneseq
        %v1729 = vshrl.u32 %v1728, 7
        %v1730 = vsub.s32 0, %v1729
        %v1731 = vrot.slane %v1726, %v1730
        %v1733 = vmul.f32 %v1664, %v1731
        %v1734 = vmul.f32 %v1667, %v1731
        %v1735 = vmul.f32 %v1672, %v1731
        %v1736 = vmul.f32 %v1675, %v1731
        %v1737 = vmul.f32 %v1680, %v1731
        %v1738 = vmul.f32 %v1683, %v1731
        %v1739 = vmul.f32 %v1688, %v1731
        %v1740 = vmul.f32 %v1691, %v1731
        %v1741 = vmul.f32 %v1696, %v1731
        %v1742 = vmul.f32 %v1699, %v1731
        %v1743 = vmul.f32 %v1704, %v1731
        %v1744 = vmul.f32 %v1707, %v1731
        %v1745 = vmul.f32 %v1712, %v1731
        %v1746 = vmul.f32 %v1715, %v1731
        %v1747 = vmul.f32 %v1720, %v1731
        %v1748 = vmul.f32 %v1723, %v1731
        %v1749 = vld [vmem:[%s6] sm:$0x1]
        %v1751 = vlaneseq
        %v1752 = vshrl.u32 %v1751, 7
        %v1753 = vsub.s32 0, %v1752
        %v1754 = vrot.slane %v1749, %v1753
        %v1756 = vadd.f32 %v1733, %v1754
        %v1757 = vadd.f32 %v1734, %v1754
        %v1758 = vadd.f32 %v1735, %v1754
        %v1759 = vadd.f32 %v1736, %v1754
        %v1760 = vadd.f32 %v1737, %v1754
        %v1761 = vadd.f32 %v1738, %v1754
        %v1762 = vadd.f32 %v1739, %v1754
        %v1763 = vadd.f32 %v1740, %v1754
        %v1764 = vadd.f32 %v1741, %v1754
        %v1765 = vadd.f32 %v1742, %v1754
        %v1766 = vadd.f32 %v1743, %v1754
        %v1767 = vadd.f32 %v1744, %v1754
        %v1768 = vadd.f32 %v1745, %v1754
        %v1769 = vadd.f32 %v1746, %v1754
        %v1770 = vadd.f32 %v1747, %v1754
        %v1771 = vadd.f32 %v1748, %v1754
        %v1772 = vmax.f32 %v1756, 0.0
        %v1773 = vmax.f32 %v1757, 0.0
        %v1774 = vmax.f32 %v1758, 0.0
        %v1775 = vmax.f32 %v1759, 0.0
        %v1776 = vmax.f32 %v1760, 0.0
        %v1777 = vmax.f32 %v1761, 0.0
        %v1778 = vmax.f32 %v1762, 0.0
        %v1779 = vmax.f32 %v1763, 0.0
        %v1780 = vmax.f32 %v1764, 0.0
        %v1781 = vmax.f32 %v1765, 0.0
        %v1782 = vmax.f32 %v1766, 0.0
        %v1783 = vmax.f32 %v1767, 0.0
        %v1784 = vmax.f32 %v1768, 0.0
        %v1785 = vmax.f32 %v1769, 0.0
        %v1786 = vmax.f32 %v1770, 0.0
        %v1787 = vmax.f32 %v1771, 0.0
        %v1788 = vpack.c.bf16 %v1773, %v1772
        %v1789 = vpack.c.bf16 %v1775, %v1774
        %v1790 = vpack.c.bf16 %v1777, %v1776
        %v1791 = vpack.c.bf16 %v1779, %v1778
        %v1792 = vpack.c.bf16 %v1781, %v1780
        %v1793 = vpack.c.bf16 %v1783, %v1782
        %v1794 = vpack.c.bf16 %v1785, %v1784
        %v1795 = vpack.c.bf16 %v1787, %v1786
        %v1796 = vld [vmem:[%s7] sm:$0xf]
        %v1797 = vld [vmem:[%s7 + $0x4] sm:$0xf]
        %v1798 = vld [vmem:[%s7 + $0x8] sm:$0xf]
        %v1799 = vld [vmem:[%s7 + $0xc] sm:$0xf]
        %v1804 = vunpack.c.l.b16 %v1796
        %v1805 = vunpack.c.l.b16 %v1797
        %v1806 = vunpack.c.l.b16 %v1798
        %v1807 = vunpack.c.l.b16 %v1799
        %v1808 = vpack.c.b16 %v1805, %v1804
        %v1809 = vpack.c.b16 %v1807, %v1806
        %v1813 = vsel %vm1241, %v1788, 0
        %v1816 = vsel %vm1241, %v1789, 0
        %v1819 = vsel %vm1241, %v1790, 0
        %v1822 = vsel %vm1241, %v1791, 0
        %v1825 = vsel %vm1241, %v1792, 0
        %v1828 = vsel %vm1241, %v1793, 0
        %v1831 = vsel %vm1241, %v1794, 0
        %v1834 = vsel %vm1241, %v1795, 0
        %1836 = vmatprep.subr.bf16.mxu0 0
        %1837 = vmatpush1.bf16.msra.mxu0 %v1808
        %1838 = vmatprep.subr.bf16.mxu0 0
        %1839 = vmatpush1.bf16.msra.mxu0 %v1809
        %1840 = vmatprep.subr.bf16.mxu0 0
        %1841 = vmatpush1.bf16.msra.mxu0 0
        %1842 = vmatprep.subr.bf16.mxu0 0
        %1843 = vmatpush1.bf16.msra.mxu0 0
        %1844 = vmatprep.subr.bf16.mxu0 0
        %1845 = vmatpush1.bf16.msra.mxu0 0
        %1846 = vmatprep.subr.bf16.mxu0 0
        %1847 = vmatpush1.bf16.msra.mxu0 0
        %1848 = vmatprep.subr.bf16.mxu0 0
        %1849 = vmatpush1.bf16.msra.mxu0 0
        %1850 = vmatprep.subr.bf16.mxu0 0
        %1851 = vmatpush1.bf16.msra.mxu0 0
        %1852 = vmatprep.subr.bf16.mxu0 0
        %1853 = vmatpush1.bf16.msra.mxu0 0
        %1854 = vmatprep.subr.bf16.mxu0 0
        %1855 = vmatpush1.bf16.msra.mxu0 0
        %1856 = vmatprep.subr.bf16.mxu0 0
        %1857 = vmatpush1.bf16.msra.mxu0 0
        %1858 = vmatprep.subr.bf16.mxu0 0
        %1859 = vmatpush1.bf16.msra.mxu0 0
        %1860 = vmatprep.subr.bf16.mxu0 0
        %1861 = vmatpush1.bf16.msra.mxu0 0
        %1862 = vmatprep.subr.bf16.mxu0 0
        %1863 = vmatpush1.bf16.msra.mxu0 0
        %1864 = vmatprep.subr.bf16.mxu0 0
        %1865 = vmatpush1.bf16.msra.mxu0 0
        %1866 = vmatprep.subr.bf16.mxu0 0
        %1867 = vmatpush1.bf16.msra.mxu0 0
        %1868 = vmatprep.mubr.bf16.mxu0 0
        %1869 = vmatmul.mubr.bf16.gmra.mrb[0].mxu0 %v1813
        %v1870 = vpop.f32.mrb[0].mxu0
        %v1871 = vadd.f32 0.0, %v1870
        %v1872 = vpop.f32.mrb[0].mxu0
        %v1873 = vpop.f32.mrb[0].mxu0
        %v1874 = vadd.f32 0.0, %v1873
        %v1875 = vpop.f32.mrb[0].mxu0
        %1876 = vmatprep.mubr.bf16.mxu0 0
        %1877 = vmatmul.mubr.bf16.gmra.mrb[0].mxu0 %v1816
        %v1878 = vpop.f32.mrb[0].mxu0
        %v1879 = vadd.f32 0.0, %v1878
        %v1880 = vpop.f32.mrb[0].mxu0
        %v1881 = vpop.f32.mrb[0].mxu0
        %v1882 = vadd.f32 0.0, %v1881
        %v1883 = vpop.f32.mrb[0].mxu0
        %1884 = vmatprep.mubr.bf16.mxu0 0
        %1885 = vmatmul.mubr.bf16.gmra.mrb[0].mxu0 %v1819
        %v1886 = vpop.f32.mrb[0].mxu0
        %v1887 = vadd.f32 0.0, %v1886
        %v1888 = vpop.f32.mrb[0].mxu0
        %v1889 = vpop.f32.mrb[0].mxu0
        %v1890 = vadd.f32 0.0, %v1889
        %v1891 = vpop.f32.mrb[0].mxu0
        %1892 = vmatprep.mubr.bf16.mxu0 0
        %1893 = vmatmul.mubr.bf16.gmra.mrb[0].mxu0 %v1822
        %v1894 = vpop.f32.mrb[0].mxu0
        %v1895 = vadd.f32 0.0, %v1894
        %v1896 = vpop.f32.mrb[0].mxu0
        %v1897 = vpop.f32.mrb[0].mxu0
        %v1898 = vadd.f32 0.0, %v1897
        %v1899 = vpop.f32.mrb[0].mxu0
        %1900 = vmatprep.mubr.bf16.mxu0 0
        %1901 = vmatmul.mubr.bf16.gmra.mrb[0].mxu0 %v1825
        %v1902 = vpop.f32.mrb[0].mxu0
        %v1903 = vadd.f32 0.0, %v1902
        %v1904 = vpop.f32.mrb[0].mxu0
        %v1905 = vpop.f32.mrb[0].mxu0
        %v1906 = vadd.f32 0.0, %v1905
        %v1907 = vpop.f32.mrb[0].mxu0
        %1908 = vmatprep.mubr.bf16.mxu0 0
        %1909 = vmatmul.mubr.bf16.gmra.mrb[0].mxu0 %v1828
        %v1910 = vpop.f32.mrb[0].mxu0
        %v1911 = vadd.f32 0.0, %v1910
        %v1912 = vpop.f32.mrb[0].mxu0
        %v1913 = vpop.f32.mrb[0].mxu0
        %v1914 = vadd.f32 0.0, %v1913
        %v1915 = vpop.f32.mrb[0].mxu0
        %1916 = vmatprep.mubr.bf16.mxu0 0
        %1917 = vmatmul.mubr.bf16.gmra.mrb[0].mxu0 %v1831
        %v1918 = vpop.f32.mrb[0].mxu0
        %v1919 = vadd.f32 0.0, %v1918
        %v1920 = vpop.f32.mrb[0].mxu0
        %v1921 = vpop.f32.mrb[0].mxu0
        %v1922 = vadd.f32 0.0, %v1921
        %v1923 = vpop.f32.mrb[0].mxu0
        %1924 = vmatprep.mubr.bf16.mxu0 0
        %1925 = vmatmul.mubr.bf16.gmra.mrb[0].mxu0 %v1834
        %v1926 = vpop.f32.mrb[0].mxu0
        %v1927 = vadd.f32 0.0, %v1926
        %v1928 = vpop.f32.mrb[0].mxu0
        %v1929 = vpop.f32.mrb[0].mxu0
        %v1930 = vadd.f32 0.0, %v1929
        %v1931 = vpop.f32.mrb[0].mxu0
        %1932 = vdwg.mxu0
        %v1933 = vld [vmem:[%s8] sm:$0x1]
        %v1935 = vlaneseq
        %v1936 = vshrl.u32 %v1935, 7
        %v1937 = vsub.s32 0, %v1936
        %v1938 = vrot.slane %v1933, %v1937
        %v1940 = vmul.f32 %v1871, %v1938
        %v1941 = vmul.f32 %v1874, %v1938
        %v1942 = vmul.f32 %v1879, %v1938
        %v1943 = vmul.f32 %v1882, %v1938
        %v1944 = vmul.f32 %v1887, %v1938
        %v1945 = vmul.f32 %v1890, %v1938
        %v1946 = vmul.f32 %v1895, %v1938
        %v1947 = vmul.f32 %v1898, %v1938
        %v1948 = vmul.f32 %v1903, %v1938
        %v1949 = vmul.f32 %v1906, %v1938
        %v1950 = vmul.f32 %v1911, %v1938
        %v1951 = vmul.f32 %v1914, %v1938
        %v1952 = vmul.f32 %v1919, %v1938
        %v1953 = vmul.f32 %v1922, %v1938
        %v1954 = vmul.f32 %v1927, %v1938
        %v1955 = vmul.f32 %v1930, %v1938
        %v1956 = vld [vmem:[%s9] sm:$0x1]
        %v1958 = vlaneseq
        %v1959 = vshrl.u32 %v1958, 7
        %v1960 = vsub.s32 0, %v1959
        %v1961 = vrot.slane %v1956, %v1960
        %v1963 = vadd.f32 %v1940, %v1961
        %v1964 = vadd.f32 %v1941, %v1961
        %v1965 = vadd.f32 %v1942, %v1961
        %v1966 = vadd.f32 %v1943, %v1961
        %v1967 = vadd.f32 %v1944, %v1961
        %v1968 = vadd.f32 %v1945, %v1961
        %v1969 = vadd.f32 %v1946, %v1961
        %v1970 = vadd.f32 %v1947, %v1961
        %v1971 = vadd.f32 %v1948, %v1961
        %v1972 = vadd.f32 %v1949, %v1961
        %v1973 = vadd.f32 %v1950, %v1961
        %v1974 = vadd.f32 %v1951, %v1961
        %v1975 = vadd.f32 %v1952, %v1961
        %v1976 = vadd.f32 %v1953, %v1961
        %v1977 = vadd.f32 %v1954, %v1961
        %v1978 = vadd.f32 %v1955, %v1961
        %v1979 = vadd.f32 %v1963, %v389
        %v1980 = vadd.f32 %v1964, %v390
        %v1981 = vadd.f32 %v1965, %v391
        %v1982 = vadd.f32 %v1966, %v392
        %v1983 = vadd.f32 %v1967, %v393
        %v1984 = vadd.f32 %v1968, %v394
        %v1985 = vadd.f32 %v1969, %v395
        %v1986 = vadd.f32 %v1970, %v396
        %v1987 = vadd.f32 %v1971, %v397
        %v1988 = vadd.f32 %v1972, %v398
        %v1989 = vadd.f32 %v1973, %v399
        %v1990 = vadd.f32 %v1974, %v400
        %v1991 = vadd.f32 %v1975, %v401
        %v1992 = vadd.f32 %v1976, %v402
        %v1993 = vadd.f32 %v1977, %v403
        %v1994 = vadd.f32 %v1978, %v404
        %v1995 = vmax.f32 %v1979, 0.0
        %v1996 = vmax.f32 %v1980, 0.0
        %v1997 = vmax.f32 %v1981, 0.0
        %v1998 = vmax.f32 %v1982, 0.0
        %v1999 = vmax.f32 %v1983, 0.0
        %v2000 = vmax.f32 %v1984, 0.0
        %v2001 = vmax.f32 %v1985, 0.0
        %v2002 = vmax.f32 %v1986, 0.0
        %v2003 = vmax.f32 %v1987, 0.0
        %v2004 = vmax.f32 %v1988, 0.0
        %v2005 = vmax.f32 %v1989, 0.0
        %v2006 = vmax.f32 %v1990, 0.0
        %v2007 = vmax.f32 %v1991, 0.0
        %v2008 = vmax.f32 %v1992, 0.0
        %v2009 = vmax.f32 %v1993, 0.0
        %v2010 = vmax.f32 %v1994, 0.0
        %2011 = vst [vmem:[%s376] sm:$0xff] %v1995
        %2012 = vst [vmem:[%s376 + $0x8] sm:$0xff] %v1996
        %2013 = vst [vmem:[%s376 + $0x10] sm:$0xff] %v1997
        %2014 = vst [vmem:[%s376 + $0x18] sm:$0xff] %v1998
        %2015 = vst [vmem:[%s376 + $0x20] sm:$0xff] %v1999
        %2016 = vst [vmem:[%s376 + $0x28] sm:$0xff] %v2000
        %2017 = vst [vmem:[%s376 + $0x30] sm:$0xff] %v2001
        %2018 = vst [vmem:[%s376 + $0x38] sm:$0xff] %v2002
        %2019 = vst [vmem:[%s376 + $0x40] sm:$0xff] %v2003
        %2020 = vst [vmem:[%s376 + $0x48] sm:$0xff] %v2004
        %2021 = vst [vmem:[%s376 + $0x50] sm:$0xff] %v2005
        %2022 = vst [vmem:[%s376 + $0x58] sm:$0xff] %v2006
        %2023 = vst [vmem:[%s376 + $0x60] sm:$0xff] %v2007
        %2024 = vst [vmem:[%s376 + $0x68] sm:$0xff] %v2008
        %2025 = vst [vmem:[%s376 + $0x70] sm:$0xff] %v2009
        %2026 = vst [vmem:[%s376 + $0x78] sm:$0xff] %v2010
        %s2027 = sand.u32 %s263, 1
        %s2028 = scalar_lea.sflag [#allocation3], %s2027
        %s2029 = sand.u32 %s263, 1
        %s2030 = smul.addr %s2029, 128
        %s2031 = scalar_lea.vmem [#allocation2], %s2030
        // Predicated region
        $region61: #{bottleneck_forward.1} parent=59 // pred_check
          %p2032 = pneg %p273
        $region62: #{bottleneck_forward.1} parent=59 // pred_check_branch
          %2034 = sbr.rel (%p2032) target = $region64
        $region63: #{bottleneck_forward.1} parent=59 // pred_region
          %s2036 = ssub.s32 2048, 2048
          %2037 = vsyncadd %s2028, %s2036
          %s2038 = smul.addr %s29, 16
          %s2039 = smul.addr %s28, 32
          %s2040 = sadd.s32 %s2038, %s2039
          %s2041 = smul.addr %s2040, 128
          %s2042 = scalar_lea.hbm %s10, %s2041
          %s2043 = sshll.u32 %s2031, 4
          %s2044 = int_to_ptr.vmem [resolvable:$true] %s2043
          %2049 = dma.vmem_to_hbm [thread:$0]  %s2044, 2048, %s2042, %s2028, 128, 128, 8
        $region64: #{bottleneck_forward.1} parent=59 // pred_fallthru
          _
      $region60: #{bottleneck_forward.1} parent=5 // pred_fallthru
        _
      %p2050 = scmp.le.s32.totalorder 2, %s19
      // Predicated region
      $region65: #{bottleneck_forward.1} parent=5 // pred_check
        %p2051 = pneg %p2050
      $region66: #{bottleneck_forward.1} parent=5 // pred_check_branch
        %2053 = sbr.rel (%p2051) target = $region68
      $region67: #{bottleneck_forward.1} parent=5 // pred_region
        %s2054 = ssub.s32 %s19, 2
        // Predicated region
        $region69: #{bottleneck_forward.1} parent=67 // pred_check
          %p2055 = pneg %p279
        $region70: #{bottleneck_forward.1} parent=67 // pred_check_branch
          %2057 = sbr.rel (%p2055) target = $region72
        $region71: #{bottleneck_forward.1} parent=67 // pred_region
          %s2058 = sand.u32 %s264, 1
          %s2059 = scalar_lea.sflag [#allocation3], %s2058
          %s2060 = sand.u32 %s264, 1
          %s2061 = smul.addr %s2060, 128
          %s2062 = scalar_lea.vmem [#allocation2], %s2061
          %2063 = dma.done %s2059, 2048
        $region72: #{bottleneck_forward.1} parent=67 // pred_fallthru
          _
      $region68: #{bottleneck_forward.1} parent=5 // pred_fallthru
        _
    $region6: #{bottleneck_forward.1} parent=1 // loop_footer
      %s23 = sadd.s32 1, %s19
    $region7: #{bottleneck_forward.1} parent=1 // loop_footer_branch
      %18 = sbr.rel target = $region3
    $region8: #{bottleneck_forward.1} parent=1 // loop_exit
      _
    %2064 = vsyncpa [#allocation3], 1
    %s2065 = scalar_lea.sflag [#allocation3], 1
    %2066 = vsyncpa %s2065, 1

</llo_original>
